<compile_context>
chip_gen: v7x
topology: tpu7x:2x2x1
jax: 0.10.0
libtpu: 0.0.40
codegen_flags: <defaults>
</compile_context>

<pallas_src>
import functools

import jax
import jax.numpy as jnp
from jax import lax
from jax.experimental import pallas as pl
from jax.experimental.pallas import tpu as pltpu


def conv_fused_kernel(bias_ref, x_ref, w_ref, o_ref, *, K, W, n_parts=2):
    """Single grid step: full valid conv for the whole batch.

    bias_ref: (F,)              SMEM (scalar-prefetched) per-filter bias
    x_ref   : (C*B, H*W + K-1)  VMEM packed input, row = c*B + b, lane = h*W + w
    w_ref   : (C*B, K*K*F)      VMEM weight columns, [c*B+b, t*F+f] = weight[f,c,di,dj]
    o_ref   : (B, F, OH, OW)    VMEM output (NCHW)
    """
    CB, _ = x_ref.shape
    B, F, OH, OW = o_ref.shape
    C = CB // B
    L = OH * W  # flattened accumulation width; cols with ow >= OW are junk, cropped at store

    # Partial f32 accumulators per filter -> 2*F independent add chains (VALU ILP).
    acc = [[jnp.zeros((CB, L), jnp.float32) for _ in range(n_parts)] for _ in range(F)]

    # Fused im2col on the packed layout: each tap is a static lane-offset slice
    # (lane rotate on the XLU), shared by all filters; one vector MAC per (tap, filter)
    # with a per-sublane weight column (channel sum folded into the sublane axis).
    for di in range(K):
        for dj in range(K):
            t = di * K + dj
            s = di * W + dj
            xs = x_ref[:, s:s + L]                              # (CB, L) shifted view
            part = t % n_parts
            for f in range(F):
                wcol = w_ref[:, t * F + f: t * F + f + 1]       # (CB, 1) per-sublane weights
                acc[f][part] = acc[f][part] + wcol * xs

    for f in range(F):
        total = acc[f][0]
        for p in range(1, n_parts):
            total = total + acc[f][p]
        # Channel reduction: rows are ordered c*B + b, so summing the C contiguous
        # row chunks of height B gives the per-batch maps -> just C-1 vector adds.
        red = total[0:B, :]
        for c in range(1, C):
            red = red + total[c * B:(c + 1) * B, :]
        red = red + bias_ref[f]                                 # SMEM scalar broadcast
        # Store valid output rows; red stays lane-flattened until this crop.
        for oh in range(OH):
            o_ref[:, f, oh, :] = red[:, oh * W: oh * W + OW].astype(o_ref.dtype)


def convolution_layer(x_nchw, weight, bias):
    """Forward pass of ConvolutionLayer (fully-connected channel wiring).

    x_nchw : (B, C, H, W) float32
    weight : (F, C, K, K) float32   (stack of per-filter Convolution.weight)
    bias   : (F,)         float32   (stack of per-filter scalar Convolution.bias)
    returns: (B, F, OH, OW) float32
    """
    B, C, H, W = x_nchw.shape
    F, Cw, K, _ = weight.shape
    assert C == Cw, "channel number mismatch in forward pass in conv layer"
    OH, OW = H - K + 1, W - K + 1
    CB, PW = C * B, H * W + (K - 1)

    # Packed lane-dense input: rows ordered c*B + b (channel-major) so the in-kernel
    # channel reduction is a sum of contiguous row chunks; K-1 zero-pad keeps every
    # tap slice x[:, s : s+OH*W] in-bounds.
    x_flat = x_nchw.transpose(1, 0, 2, 3).reshape(CB, H * W)
    x_flat = jnp.pad(x_flat, ((0, 0), (0, K - 1)))

    # Per-sublane weight columns: wcols[c*B + b, t*F + f] = weight[f, c, di, dj], t = di*K + dj.
    wcols = weight.transpose(2, 3, 0, 1).reshape(K * K * F, C).T     # (C, K*K*F)
    wcols = jnp.repeat(wcols, B, axis=0)                             # (C*B, K*K*F)

    b_flat = bias.reshape(F)                                         # (F,) -> SMEM

    flops = 2 * B * F * OH * OW * C * K * K
    bytes_accessed = 4 * (x_flat.size + wcols.size + F + B * F * OH * OW)

    kernel = functools.partial(conv_fused_kernel, K=K, W=W)
    out = pl.pallas_call(
        kernel,
        out_shape=jax.ShapeDtypeStruct((B, F, OH, OW), x_nchw.dtype),
        grid_spec=pltpu.PrefetchScalarGridSpec(
            num_scalar_prefetch=1,                    # bias -> SMEM
            grid=(1,),                                # whole (tiny) batch in one step
            in_specs=[
                pl.BlockSpec((CB, PW), lambda i, b: (0, 0)),
                pl.BlockSpec((CB, K * K * F), lambda i, b: (0, 0)),
            ],
            out_specs=pl.BlockSpec((B, F, OH, OW), lambda i, b: (0, 0, 0, 0)),
        ),
        compiler_params=pltpu.CompilerParams(
            dimension_semantics=("arbitrary",)),
        cost_estimate=pl.CostEstimate(flops=flops, transcendentals=0,
                                      bytes_accessed=bytes_accessed),
    )(b_flat, x_flat, wcols)

    # NOTE: torch module does output.squeeze() (+ unsqueeze for B==1); that silently
    # drops non-batch size-1 dims (e.g. F == 1).  We return the full NCHW tensor
    # unconditionally, which matches the intended semantics for all normal configs.
    return out


def _reference(x_nchw, weight, bias):
    """Pure-JAX reference (valid conv, stride 1) for correctness check."""
    y = lax.conv_general_dilated(
        x_nchw, weight, window_strides=(1, 1), padding="VALID",
        dimension_numbers=("NCHW", "OIHW", "NCHW"))
    return y + bias[None, :, None, None]


if __name__ == "__main__":
    # Small shapes consistent with the module: batch=2, in_channels=4,
    # spatial=16, num_filters=3, filter_size=5  ->  output (2, 3, 12, 12).
    B, C, H, W = 2, 4, 16, 16
    F, K = 3, 5

    key = jax.random.PRNGKey(0)
    kx, kw, kb = jax.random.split(key, 3)
    x = jax.random.normal(kx, (B, C, H, W), dtype=jnp.float32)
    # Deterministic parameter init (module __init__ gives the shapes: per-filter
    # weight (C, K, K) stacked -> (F, C, K, K); per-filter scalar bias -> (F,)).
    weight = jax.random.normal(kw, (F, C, K, K), dtype=jnp.float32) * 0.1
    bias = jax.random.normal(kb, (F,), dtype=jnp.float32) * 0.1

    out = jax.block_until_ready(convolution_layer(x, weight, bias))
    ref = jax.block_until_ready(_reference(x, weight, bias))

    assert out.shape == (B, F, H - K + 1, W - K + 1), out.shape
    assert jnp.allclose(out, ref, rtol=1e-5, atol=1e-5), float(jnp.max(jnp.abs(out - ref)))
    print("KERNEL_OK")
</pallas_src>

<mosaic_0001>
module attributes {stable_mosaic.version = 11 : i64} {
  func.func @conv_fused_kernel(%arg0: i32, %arg1: memref<3xf32, #tpu.memory_space<smem>>, %arg2: memref<8x260xf32, #tpu.memory_space<vmem>>, %arg3: memref<8x75xf32, #tpu.memory_space<vmem>>, %arg4: memref<2x3x12x12xf32, #tpu.memory_space<vmem>>) attributes {dimension_semantics = [#tpu.dimension_semantics<arbitrary>], iteration_bounds = array<i64: 1>, scalar_prefetch = 1 : i64, scratch_operands = 0 : i64, tpu.core_type = #tpu.core_type<tc>, window_params = [{pipeline_mode = #tpu.pipeline_mode<synchronous>, transform_indices = @transform_0, window_bounds = array<i64: 8, 260>}, {pipeline_mode = #tpu.pipeline_mode<synchronous>, transform_indices = @transform_1, window_bounds = array<i64: 8, 75>}, {pipeline_mode = #tpu.pipeline_mode<synchronous>, transform_indices = @transform_2, window_bounds = array<i64: 2, 3, 12, 12>}]} {
    %cst = arith.constant 0.000000e+00 : f32
    %0 = vector.broadcast %cst : f32 to vector<8x192xf32>
    %cst_0 = arith.constant 0.000000e+00 : f32
    %1 = vector.broadcast %cst_0 : f32 to vector<8x192xf32>
    %cst_1 = arith.constant 0.000000e+00 : f32
    %2 = vector.broadcast %cst_1 : f32 to vector<8x192xf32>
    %cst_2 = arith.constant 0.000000e+00 : f32
    %3 = vector.broadcast %cst_2 : f32 to vector<8x192xf32>
    %cst_3 = arith.constant 0.000000e+00 : f32
    %4 = vector.broadcast %cst_3 : f32 to vector<8x192xf32>
    %cst_4 = arith.constant 0.000000e+00 : f32
    %5 = vector.broadcast %cst_4 : f32 to vector<8x192xf32>
    %c0 = arith.constant 0 : index
    %c0_5 = arith.constant 0 : index
    %6 = vector.load %arg2[%c0, %c0_5] : memref<8x260xf32, #tpu.memory_space<vmem>>, vector<8x192xf32>
    %c0_6 = arith.constant 0 : index
    %c0_7 = arith.constant 0 : index
    %7 = vector.load %arg3[%c0_6, %c0_7] : memref<8x75xf32, #tpu.memory_space<vmem>>, vector<8x1xf32>
    %8 = vector.broadcast %7 : vector<8x1xf32> to vector<8x192xf32>
    %9 = arith.mulf %8, %6 : vector<8x192xf32>
    %10 = arith.addf %0, %9 : vector<8x192xf32>
    %c0_8 = arith.constant 0 : index
    %c1 = arith.constant 1 : index
    %11 = vector.load %arg3[%c0_8, %c1] : memref<8x75xf32, #tpu.memory_space<vmem>>, vector<8x1xf32>
    %12 = vector.broadcast %11 : vector<8x1xf32> to vector<8x192xf32>
    %13 = arith.mulf %12, %6 : vector<8x192xf32>
    %14 = arith.addf %2, %13 : vector<8x192xf32>
    %c0_9 = arith.constant 0 : index
    %c2 = arith.constant 2 : index
    %15 = vector.load %arg3[%c0_9, %c2] : memref<8x75xf32, #tpu.memory_space<vmem>>, vector<8x1xf32>
    %16 = vector.broadcast %15 : vector<8x1xf32> to vector<8x192xf32>
    %17 = arith.mulf %16, %6 : vector<8x192xf32>
    %18 = arith.addf %4, %17 : vector<8x192xf32>
    %c0_10 = arith.constant 0 : index
    %c1_11 = arith.constant 1 : index
    %19 = vector.load %arg2[%c0_10, %c1_11] : memref<8x260xf32, #tpu.memory_space<vmem>>, vector<8x192xf32>
    %c0_12 = arith.constant 0 : index
    %c3 = arith.constant 3 : index
    %20 = vector.load %arg3[%c0_12, %c3] : memref<8x75xf32, #tpu.memory_space<vmem>>, vector<8x1xf32>
    %21 = vector.broadcast %20 : vector<8x1xf32> to vector<8x192xf32>
    %22 = arith.mulf %21, %19 : vector<8x192xf32>
    %23 = arith.addf %1, %22 : vector<8x192xf32>
    %c0_13 = arith.constant 0 : index
    %c4 = arith.constant 4 : index
    %24 = vector.load %arg3[%c0_13, %c4] : memref<8x75xf32, #tpu.memory_space<vmem>>, vector<8x1xf32>
    %25 = vector.broadcast %24 : vector<8x1xf32> to vector<8x192xf32>
    %26 = arith.mulf %25, %19 : vector<8x192xf32>
    %27 = arith.addf %3, %26 : vector<8x192xf32>
    %c0_14 = arith.constant 0 : index
    %c5 = arith.constant 5 : index
    %28 = vector.load %arg3[%c0_14, %c5] : memref<8x75xf32, #tpu.memory_space<vmem>>, vector<8x1xf32>
    %29 = vector.broadcast %28 : vector<8x1xf32> to vector<8x192xf32>
    %30 = arith.mulf %29, %19 : vector<8x192xf32>
    %31 = arith.addf %5, %30 : vector<8x192xf32>
    %c0_15 = arith.constant 0 : index
    %c2_16 = arith.constant 2 : index
    %32 = vector.load %arg2[%c0_15, %c2_16] : memref<8x260xf32, #tpu.memory_space<vmem>>, vector<8x192xf32>
    %c0_17 = arith.constant 0 : index
    %c6 = arith.constant 6 : index
    %33 = vector.load %arg3[%c0_17, %c6] : memref<8x75xf32, #tpu.memory_space<vmem>>, vector<8x1xf32>
    %34 = vector.broadcast %33 : vector<8x1xf32> to vector<8x192xf32>
    %35 = arith.mulf %34, %32 : vector<8x192xf32>
    %36 = arith.addf %10, %35 : vector<8x192xf32>
    %c0_18 = arith.constant 0 : index
    %c7 = arith.constant 7 : index
    %37 = vector.load %arg3[%c0_18, %c7] : memref<8x75xf32, #tpu.memory_space<vmem>>, vector<8x1xf32>
    %38 = vector.broadcast %37 : vector<8x1xf32> to vector<8x192xf32>
    %39 = arith.mulf %38, %32 : vector<8x192xf32>
    %40 = arith.addf %14, %39 : vector<8x192xf32>
    %c0_19 = arith.constant 0 : index
    %c8 = arith.constant 8 : index
    %41 = vector.load %arg3[%c0_19, %c8] : memref<8x75xf32, #tpu.memory_space<vmem>>, vector<8x1xf32>
    %42 = vector.broadcast %41 : vector<8x1xf32> to vector<8x192xf32>
    %43 = arith.mulf %42, %32 : vector<8x192xf32>
    %44 = arith.addf %18, %43 : vector<8x192xf32>
    %c0_20 = arith.constant 0 : index
    %c3_21 = arith.constant 3 : index
    %45 = vector.load %arg2[%c0_20, %c3_21] : memref<8x260xf32, #tpu.memory_space<vmem>>, vector<8x192xf32>
    %c0_22 = arith.constant 0 : index
    %c9 = arith.constant 9 : index
    %46 = vector.load %arg3[%c0_22, %c9] : memref<8x75xf32, #tpu.memory_space<vmem>>, vector<8x1xf32>
    %47 = vector.broadcast %46 : vector<8x1xf32> to vector<8x192xf32>
    %48 = arith.mulf %47, %45 : vector<8x192xf32>
    %49 = arith.addf %23, %48 : vector<8x192xf32>
    %c0_23 = arith.constant 0 : index
    %c10 = arith.constant 10 : index
    %50 = vector.load %arg3[%c0_23, %c10] : memref<8x75xf32, #tpu.memory_space<vmem>>, vector<8x1xf32>
    %51 = vector.broadcast %50 : vector<8x1xf32> to vector<8x192xf32>
    %52 = arith.mulf %51, %45 : vector<8x192xf32>
    %53 = arith.addf %27, %52 : vector<8x192xf32>
    %c0_24 = arith.constant 0 : index
    %c11 = arith.constant 11 : index
    %54 = vector.load %arg3[%c0_24, %c11] : memref<8x75xf32, #tpu.memory_space<vmem>>, vector<8x1xf32>
    %55 = vector.broadcast %54 : vector<8x1xf32> to vector<8x192xf32>
    %56 = arith.mulf %55, %45 : vector<8x192xf32>
    %57 = arith.addf %31, %56 : vector<8x192xf32>
    %c0_25 = arith.constant 0 : index
    %c4_26 = arith.constant 4 : index
    %58 = vector.load %arg2[%c0_25, %c4_26] : memref<8x260xf32, #tpu.memory_space<vmem>>, vector<8x192xf32>
    %c0_27 = arith.constant 0 : index
    %c12 = arith.constant 12 : index
    %59 = vector.load %arg3[%c0_27, %c12] : memref<8x75xf32, #tpu.memory_space<vmem>>, vector<8x1xf32>
    %60 = vector.broadcast %59 : vector<8x1xf32> to vector<8x192xf32>
    %61 = arith.mulf %60, %58 : vector<8x192xf32>
    %62 = arith.addf %36, %61 : vector<8x192xf32>
    %c0_28 = arith.constant 0 : index
    %c13 = arith.constant 13 : index
    %63 = vector.load %arg3[%c0_28, %c13] : memref<8x75xf32, #tpu.memory_space<vmem>>, vector<8x1xf32>
    %64 = vector.broadcast %63 : vector<8x1xf32> to vector<8x192xf32>
    %65 = arith.mulf %64, %58 : vector<8x192xf32>
    %66 = arith.addf %40, %65 : vector<8x192xf32>
    %c0_29 = arith.constant 0 : index
    %c14 = arith.constant 14 : index
    %67 = vector.load %arg3[%c0_29, %c14] : memref<8x75xf32, #tpu.memory_space<vmem>>, vector<8x1xf32>
    %68 = vector.broadcast %67 : vector<8x1xf32> to vector<8x192xf32>
    %69 = arith.mulf %68, %58 : vector<8x192xf32>
    %70 = arith.addf %44, %69 : vector<8x192xf32>
    %c0_30 = arith.constant 0 : index
    %c16 = arith.constant 16 : index
    %71 = vector.load %arg2[%c0_30, %c16] : memref<8x260xf32, #tpu.memory_space<vmem>>, vector<8x192xf32>
    %c0_31 = arith.constant 0 : index
    %c15 = arith.constant 15 : index
    %72 = vector.load %arg3[%c0_31, %c15] : memref<8x75xf32, #tpu.memory_space<vmem>>, vector<8x1xf32>
    %73 = vector.broadcast %72 : vector<8x1xf32> to vector<8x192xf32>
    %74 = arith.mulf %73, %71 : vector<8x192xf32>
    %75 = arith.addf %49, %74 : vector<8x192xf32>
    %c0_32 = arith.constant 0 : index
    %c16_33 = arith.constant 16 : index
    %76 = vector.load %arg3[%c0_32, %c16_33] : memref<8x75xf32, #tpu.memory_space<vmem>>, vector<8x1xf32>
    %77 = vector.broadcast %76 : vector<8x1xf32> to vector<8x192xf32>
    %78 = arith.mulf %77, %71 : vector<8x192xf32>
    %79 = arith.addf %53, %78 : vector<8x192xf32>
    %c0_34 = arith.constant 0 : index
    %c17 = arith.constant 17 : index
    %80 = vector.load %arg3[%c0_34, %c17] : memref<8x75xf32, #tpu.memory_space<vmem>>, vector<8x1xf32>
    %81 = vector.broadcast %80 : vector<8x1xf32> to vector<8x192xf32>
    %82 = arith.mulf %81, %71 : vector<8x192xf32>
    %83 = arith.addf %57, %82 : vector<8x192xf32>
    %c0_35 = arith.constant 0 : index
    %c17_36 = arith.constant 17 : index
    %84 = vector.load %arg2[%c0_35, %c17_36] : memref<8x260xf32, #tpu.memory_space<vmem>>, vector<8x192xf32>
    %c0_37 = arith.constant 0 : index
    %c18 = arith.constant 18 : index
    %85 = vector.load %arg3[%c0_37, %c18] : memref<8x75xf32, #tpu.memory_space<vmem>>, vector<8x1xf32>
    %86 = vector.broadcast %85 : vector<8x1xf32> to vector<8x192xf32>
    %87 = arith.mulf %86, %84 : vector<8x192xf32>
    %88 = arith.addf %62, %87 : vector<8x192xf32>
    %c0_38 = arith.constant 0 : index
    %c19 = arith.constant 19 : index
    %89 = vector.load %arg3[%c0_38, %c19] : memref<8x75xf32, #tpu.memory_space<vmem>>, vector<8x1xf32>
    %90 = vector.broadcast %89 : vector<8x1xf32> to vector<8x192xf32>
    %91 = arith.mulf %90, %84 : vector<8x192xf32>
    %92 = arith.addf %66, %91 : vector<8x192xf32>
    %c0_39 = arith.constant 0 : index
    %c20 = arith.constant 20 : index
    %93 = vector.load %arg3[%c0_39, %c20] : memref<8x75xf32, #tpu.memory_space<vmem>>, vector<8x1xf32>
    %94 = vector.broadcast %93 : vector<8x1xf32> to vector<8x192xf32>
    %95 = arith.mulf %94, %84 : vector<8x192xf32>
    %96 = arith.addf %70, %95 : vector<8x192xf32>
    %c0_40 = arith.constant 0 : index
    %c18_41 = arith.constant 18 : index
    %97 = vector.load %arg2[%c0_40, %c18_41] : memref<8x260xf32, #tpu.memory_space<vmem>>, vector<8x192xf32>
    %c0_42 = arith.constant 0 : index
    %c21 = arith.constant 21 : index
    %98 = vector.load %arg3[%c0_42, %c21] : memref<8x75xf32, #tpu.memory_space<vmem>>, vector<8x1xf32>
    %99 = vector.broadcast %98 : vector<8x1xf32> to vector<8x192xf32>
    %100 = arith.mulf %99, %97 : vector<8x192xf32>
    %101 = arith.addf %75, %100 : vector<8x192xf32>
    %c0_43 = arith.constant 0 : index
    %c22 = arith.constant 22 : index
    %102 = vector.load %arg3[%c0_43, %c22] : memref<8x75xf32, #tpu.memory_space<vmem>>, vector<8x1xf32>
    %103 = vector.broadcast %102 : vector<8x1xf32> to vector<8x192xf32>
    %104 = arith.mulf %103, %97 : vector<8x192xf32>
    %105 = arith.addf %79, %104 : vector<8x192xf32>
    %c0_44 = arith.constant 0 : index
    %c23 = arith.constant 23 : index
    %106 = vector.load %arg3[%c0_44, %c23] : memref<8x75xf32, #tpu.memory_space<vmem>>, vector<8x1xf32>
    %107 = vector.broadcast %106 : vector<8x1xf32> to vector<8x192xf32>
    %108 = arith.mulf %107, %97 : vector<8x192xf32>
    %109 = arith.addf %83, %108 : vector<8x192xf32>
    %c0_45 = arith.constant 0 : index
    %c19_46 = arith.constant 19 : index
    %110 = vector.load %arg2[%c0_45, %c19_46] : memref<8x260xf32, #tpu.memory_space<vmem>>, vector<8x192xf32>
    %c0_47 = arith.constant 0 : index
    %c24 = arith.constant 24 : index
    %111 = vector.load %arg3[%c0_47, %c24] : memref<8x75xf32, #tpu.memory_space<vmem>>, vector<8x1xf32>
    %112 = vector.broadcast %111 : vector<8x1xf32> to vector<8x192xf32>
    %113 = arith.mulf %112, %110 : vector<8x192xf32>
    %114 = arith.addf %88, %113 : vector<8x192xf32>
    %c0_48 = arith.constant 0 : index
    %c25 = arith.constant 25 : index
    %115 = vector.load %arg3[%c0_48, %c25] : memref<8x75xf32, #tpu.memory_space<vmem>>, vector<8x1xf32>
    %116 = vector.broadcast %115 : vector<8x1xf32> to vector<8x192xf32>
    %117 = arith.mulf %116, %110 : vector<8x192xf32>
    %118 = arith.addf %92, %117 : vector<8x192xf32>
    %c0_49 = arith.constant 0 : index
    %c26 = arith.constant 26 : index
    %119 = vector.load %arg3[%c0_49, %c26] : memref<8x75xf32, #tpu.memory_space<vmem>>, vector<8x1xf32>
    %120 = vector.broadcast %119 : vector<8x1xf32> to vector<8x192xf32>
    %121 = arith.mulf %120, %110 : vector<8x192xf32>
    %122 = arith.addf %96, %121 : vector<8x192xf32>
    %c0_50 = arith.constant 0 : index
    %c20_51 = arith.constant 20 : index
    %123 = vector.load %arg2[%c0_50, %c20_51] : memref<8x260xf32, #tpu.memory_space<vmem>>, vector<8x192xf32>
    %c0_52 = arith.constant 0 : index
    %c27 = arith.constant 27 : index
    %124 = vector.load %arg3[%c0_52, %c27] : memref<8x75xf32, #tpu.memory_space<vmem>>, vector<8x1xf32>
    %125 = vector.broadcast %124 : vector<8x1xf32> to vector<8x192xf32>
    %126 = arith.mulf %125, %123 : vector<8x192xf32>
    %127 = arith.addf %101, %126 : vector<8x192xf32>
    %c0_53 = arith.constant 0 : index
    %c28 = arith.constant 28 : index
    %128 = vector.load %arg3[%c0_53, %c28] : memref<8x75xf32, #tpu.memory_space<vmem>>, vector<8x1xf32>
    %129 = vector.broadcast %128 : vector<8x1xf32> to vector<8x192xf32>
    %130 = arith.mulf %129, %123 : vector<8x192xf32>
    %131 = arith.addf %105, %130 : vector<8x192xf32>
    %c0_54 = arith.constant 0 : index
    %c29 = arith.constant 29 : index
    %132 = vector.load %arg3[%c0_54, %c29] : memref<8x75xf32, #tpu.memory_space<vmem>>, vector<8x1xf32>
    %133 = vector.broadcast %132 : vector<8x1xf32> to vector<8x192xf32>
    %134 = arith.mulf %133, %123 : vector<8x192xf32>
    %135 = arith.addf %109, %134 : vector<8x192xf32>
    %c0_55 = arith.constant 0 : index
    %c32 = arith.constant 32 : index
    %136 = vector.load %arg2[%c0_55, %c32] : memref<8x260xf32, #tpu.memory_space<vmem>>, vector<8x192xf32>
    %c0_56 = arith.constant 0 : index
    %c30 = arith.constant 30 : index
    %137 = vector.load %arg3[%c0_56, %c30] : memref<8x75xf32, #tpu.memory_space<vmem>>, vector<8x1xf32>
    %138 = vector.broadcast %137 : vector<8x1xf32> to vector<8x192xf32>
    %139 = arith.mulf %138, %136 : vector<8x192xf32>
    %140 = arith.addf %114, %139 : vector<8x192xf32>
    %c0_57 = arith.constant 0 : index
    %c31 = arith.constant 31 : index
    %141 = vector.load %arg3[%c0_57, %c31] : memref<8x75xf32, #tpu.memory_space<vmem>>, vector<8x1xf32>
    %142 = vector.broadcast %141 : vector<8x1xf32> to vector<8x192xf32>
    %143 = arith.mulf %142, %136 : vector<8x192xf32>
    %144 = arith.addf %118, %143 : vector<8x192xf32>
    %c0_58 = arith.constant 0 : index
    %c32_59 = arith.constant 32 : index
    %145 = vector.load %arg3[%c0_58, %c32_59] : memref<8x75xf32, #tpu.memory_space<vmem>>, vector<8x1xf32>
    %146 = vector.broadcast %145 : vector<8x1xf32> to vector<8x192xf32>
    %147 = arith.mulf %146, %136 : vector<8x192xf32>
    %148 = arith.addf %122, %147 : vector<8x192xf32>
    %c0_60 = arith.constant 0 : index
    %c33 = arith.constant 33 : index
    %149 = vector.load %arg2[%c0_60, %c33] : memref<8x260xf32, #tpu.memory_space<vmem>>, vector<8x192xf32>
    %c0_61 = arith.constant 0 : index
    %c33_62 = arith.constant 33 : index
    %150 = vector.load %arg3[%c0_61, %c33_62] : memref<8x75xf32, #tpu.memory_space<vmem>>, vector<8x1xf32>
    %151 = vector.broadcast %150 : vector<8x1xf32> to vector<8x192xf32>
    %152 = arith.mulf %151, %149 : vector<8x192xf32>
    %153 = arith.addf %127, %152 : vector<8x192xf32>
    %c0_63 = arith.constant 0 : index
    %c34 = arith.constant 34 : index
    %154 = vector.load %arg3[%c0_63, %c34] : memref<8x75xf32, #tpu.memory_space<vmem>>, vector<8x1xf32>
    %155 = vector.broadcast %154 : vector<8x1xf32> to vector<8x192xf32>
    %156 = arith.mulf %155, %149 : vector<8x192xf32>
    %157 = arith.addf %131, %156 : vector<8x192xf32>
    %c0_64 = arith.constant 0 : index
    %c35 = arith.constant 35 : index
    %158 = vector.load %arg3[%c0_64, %c35] : memref<8x75xf32, #tpu.memory_space<vmem>>, vector<8x1xf32>
    %159 = vector.broadcast %158 : vector<8x1xf32> to vector<8x192xf32>
    %160 = arith.mulf %159, %149 : vector<8x192xf32>
    %161 = arith.addf %135, %160 : vector<8x192xf32>
    %c0_65 = arith.constant 0 : index
    %c34_66 = arith.constant 34 : index
    %162 = vector.load %arg2[%c0_65, %c34_66] : memref<8x260xf32, #tpu.memory_space<vmem>>, vector<8x192xf32>
    %c0_67 = arith.constant 0 : index
    %c36 = arith.constant 36 : index
    %163 = vector.load %arg3[%c0_67, %c36] : memref<8x75xf32, #tpu.memory_space<vmem>>, vector<8x1xf32>
    %164 = vector.broadcast %163 : vector<8x1xf32> to vector<8x192xf32>
    %165 = arith.mulf %164, %162 : vector<8x192xf32>
    %166 = arith.addf %140, %165 : vector<8x192xf32>
    %c0_68 = arith.constant 0 : index
    %c37 = arith.constant 37 : index
    %167 = vector.load %arg3[%c0_68, %c37] : memref<8x75xf32, #tpu.memory_space<vmem>>, vector<8x1xf32>
    %168 = vector.broadcast %167 : vector<8x1xf32> to vector<8x192xf32>
    %169 = arith.mulf %168, %162 : vector<8x192xf32>
    %170 = arith.addf %144, %169 : vector<8x192xf32>
    %c0_69 = arith.constant 0 : index
    %c38 = arith.constant 38 : index
    %171 = vector.load %arg3[%c0_69, %c38] : memref<8x75xf32, #tpu.memory_space<vmem>>, vector<8x1xf32>
    %172 = vector.broadcast %171 : vector<8x1xf32> to vector<8x192xf32>
    %173 = arith.mulf %172, %162 : vector<8x192xf32>
    %174 = arith.addf %148, %173 : vector<8x192xf32>
    %c0_70 = arith.constant 0 : index
    %c35_71 = arith.constant 35 : index
    %175 = vector.load %arg2[%c0_70, %c35_71] : memref<8x260xf32, #tpu.memory_space<vmem>>, vector<8x192xf32>
    %c0_72 = arith.constant 0 : index
    %c39 = arith.constant 39 : index
    %176 = vector.load %arg3[%c0_72, %c39] : memref<8x75xf32, #tpu.memory_space<vmem>>, vector<8x1xf32>
    %177 = vector.broadcast %176 : vector<8x1xf32> to vector<8x192xf32>
    %178 = arith.mulf %177, %175 : vector<8x192xf32>
    %179 = arith.addf %153, %178 : vector<8x192xf32>
    %c0_73 = arith.constant 0 : index
    %c40 = arith.constant 40 : index
    %180 = vector.load %arg3[%c0_73, %c40] : memref<8x75xf32, #tpu.memory_space<vmem>>, vector<8x1xf32>
    %181 = vector.broadcast %180 : vector<8x1xf32> to vector<8x192xf32>
    %182 = arith.mulf %181, %175 : vector<8x192xf32>
    %183 = arith.addf %157, %182 : vector<8x192xf32>
    %c0_74 = arith.constant 0 : index
    %c41 = arith.constant 41 : index
    %184 = vector.load %arg3[%c0_74, %c41] : memref<8x75xf32, #tpu.memory_space<vmem>>, vector<8x1xf32>
    %185 = vector.broadcast %184 : vector<8x1xf32> to vector<8x192xf32>
    %186 = arith.mulf %185, %175 : vector<8x192xf32>
    %187 = arith.addf %161, %186 : vector<8x192xf32>
    %c0_75 = arith.constant 0 : index
    %c36_76 = arith.constant 36 : index
    %188 = vector.load %arg2[%c0_75, %c36_76] : memref<8x260xf32, #tpu.memory_space<vmem>>, vector<8x192xf32>
    %c0_77 = arith.constant 0 : index
    %c42 = arith.constant 42 : index
    %189 = vector.load %arg3[%c0_77, %c42] : memref<8x75xf32, #tpu.memory_space<vmem>>, vector<8x1xf32>
    %190 = vector.broadcast %189 : vector<8x1xf32> to vector<8x192xf32>
    %191 = arith.mulf %190, %188 : vector<8x192xf32>
    %192 = arith.addf %166, %191 : vector<8x192xf32>
    %c0_78 = arith.constant 0 : index
    %c43 = arith.constant 43 : index
    %193 = vector.load %arg3[%c0_78, %c43] : memref<8x75xf32, #tpu.memory_space<vmem>>, vector<8x1xf32>
    %194 = vector.broadcast %193 : vector<8x1xf32> to vector<8x192xf32>
    %195 = arith.mulf %194, %188 : vector<8x192xf32>
    %196 = arith.addf %170, %195 : vector<8x192xf32>
    %c0_79 = arith.constant 0 : index
    %c44 = arith.constant 44 : index
    %197 = vector.load %arg3[%c0_79, %c44] : memref<8x75xf32, #tpu.memory_space<vmem>>, vector<8x1xf32>
    %198 = vector.broadcast %197 : vector<8x1xf32> to vector<8x192xf32>
    %199 = arith.mulf %198, %188 : vector<8x192xf32>
    %200 = arith.addf %174, %199 : vector<8x192xf32>
    %c0_80 = arith.constant 0 : index
    %c48 = arith.constant 48 : index
    %201 = vector.load %arg2[%c0_80, %c48] : memref<8x260xf32, #tpu.memory_space<vmem>>, vector<8x192xf32>
    %c0_81 = arith.constant 0 : index
    %c45 = arith.constant 45 : index
    %202 = vector.load %arg3[%c0_81, %c45] : memref<8x75xf32, #tpu.memory_space<vmem>>, vector<8x1xf32>
    %203 = vector.broadcast %202 : vector<8x1xf32> to vector<8x192xf32>
    %204 = arith.mulf %203, %201 : vector<8x192xf32>
    %205 = arith.addf %179, %204 : vector<8x192xf32>
    %c0_82 = arith.constant 0 : index
    %c46 = arith.constant 46 : index
    %206 = vector.load %arg3[%c0_82, %c46] : memref<8x75xf32, #tpu.memory_space<vmem>>, vector<8x1xf32>
    %207 = vector.broadcast %206 : vector<8x1xf32> to vector<8x192xf32>
    %208 = arith.mulf %207, %201 : vector<8x192xf32>
    %209 = arith.addf %183, %208 : vector<8x192xf32>
    %c0_83 = arith.constant 0 : index
    %c47 = arith.constant 47 : index
    %210 = vector.load %arg3[%c0_83, %c47] : memref<8x75xf32, #tpu.memory_space<vmem>>, vector<8x1xf32>
    %211 = vector.broadcast %210 : vector<8x1xf32> to vector<8x192xf32>
    %212 = arith.mulf %211, %201 : vector<8x192xf32>
    %213 = arith.addf %187, %212 : vector<8x192xf32>
    %c0_84 = arith.constant 0 : index
    %c49 = arith.constant 49 : index
    %214 = vector.load %arg2[%c0_84, %c49] : memref<8x260xf32, #tpu.memory_space<vmem>>, vector<8x192xf32>
    %c0_85 = arith.constant 0 : index
    %c48_86 = arith.constant 48 : index
    %215 = vector.load %arg3[%c0_85, %c48_86] : memref<8x75xf32, #tpu.memory_space<vmem>>, vector<8x1xf32>
    %216 = vector.broadcast %215 : vector<8x1xf32> to vector<8x192xf32>
    %217 = arith.mulf %216, %214 : vector<8x192xf32>
    %218 = arith.addf %192, %217 : vector<8x192xf32>
    %c0_87 = arith.constant 0 : index
    %c49_88 = arith.constant 49 : index
    %219 = vector.load %arg3[%c0_87, %c49_88] : memref<8x75xf32, #tpu.memory_space<vmem>>, vector<8x1xf32>
    %220 = vector.broadcast %219 : vector<8x1xf32> to vector<8x192xf32>
    %221 = arith.mulf %220, %214 : vector<8x192xf32>
    %222 = arith.addf %196, %221 : vector<8x192xf32>
    %c0_89 = arith.constant 0 : index
    %c50 = arith.constant 50 : index
    %223 = vector.load %arg3[%c0_89, %c50] : memref<8x75xf32, #tpu.memory_space<vmem>>, vector<8x1xf32>
    %224 = vector.broadcast %223 : vector<8x1xf32> to vector<8x192xf32>
    %225 = arith.mulf %224, %214 : vector<8x192xf32>
    %226 = arith.addf %200, %225 : vector<8x192xf32>
    %c0_90 = arith.constant 0 : index
    %c50_91 = arith.constant 50 : index
    %227 = vector.load %arg2[%c0_90, %c50_91] : memref<8x260xf32, #tpu.memory_space<vmem>>, vector<8x192xf32>
    %c0_92 = arith.constant 0 : index
    %c51 = arith.constant 51 : index
    %228 = vector.load %arg3[%c0_92, %c51] : memref<8x75xf32, #tpu.memory_space<vmem>>, vector<8x1xf32>
    %229 = vector.broadcast %228 : vector<8x1xf32> to vector<8x192xf32>
    %230 = arith.mulf %229, %227 : vector<8x192xf32>
    %231 = arith.addf %205, %230 : vector<8x192xf32>
    %c0_93 = arith.constant 0 : index
    %c52 = arith.constant 52 : index
    %232 = vector.load %arg3[%c0_93, %c52] : memref<8x75xf32, #tpu.memory_space<vmem>>, vector<8x1xf32>
    %233 = vector.broadcast %232 : vector<8x1xf32> to vector<8x192xf32>
    %234 = arith.mulf %233, %227 : vector<8x192xf32>
    %235 = arith.addf %209, %234 : vector<8x192xf32>
    %c0_94 = arith.constant 0 : index
    %c53 = arith.constant 53 : index
    %236 = vector.load %arg3[%c0_94, %c53] : memref<8x75xf32, #tpu.memory_space<vmem>>, vector<8x1xf32>
    %237 = vector.broadcast %236 : vector<8x1xf32> to vector<8x192xf32>
    %238 = arith.mulf %237, %227 : vector<8x192xf32>
    %239 = arith.addf %213, %238 : vector<8x192xf32>
    %c0_95 = arith.constant 0 : index
    %c51_96 = arith.constant 51 : index
    %240 = vector.load %arg2[%c0_95, %c51_96] : memref<8x260xf32, #tpu.memory_space<vmem>>, vector<8x192xf32>
    %c0_97 = arith.constant 0 : index
    %c54 = arith.constant 54 : index
    %241 = vector.load %arg3[%c0_97, %c54] : memref<8x75xf32, #tpu.memory_space<vmem>>, vector<8x1xf32>
    %242 = vector.broadcast %241 : vector<8x1xf32> to vector<8x192xf32>
    %243 = arith.mulf %242, %240 : vector<8x192xf32>
    %244 = arith.addf %218, %243 : vector<8x192xf32>
    %c0_98 = arith.constant 0 : index
    %c55 = arith.constant 55 : index
    %245 = vector.load %arg3[%c0_98, %c55] : memref<8x75xf32, #tpu.memory_space<vmem>>, vector<8x1xf32>
    %246 = vector.broadcast %245 : vector<8x1xf32> to vector<8x192xf32>
    %247 = arith.mulf %246, %240 : vector<8x192xf32>
    %248 = arith.addf %222, %247 : vector<8x192xf32>
    %c0_99 = arith.constant 0 : index
    %c56 = arith.constant 56 : index
    %249 = vector.load %arg3[%c0_99, %c56] : memref<8x75xf32, #tpu.memory_space<vmem>>, vector<8x1xf32>
    %250 = vector.broadcast %249 : vector<8x1xf32> to vector<8x192xf32>
    %251 = arith.mulf %250, %240 : vector<8x192xf32>
    %252 = arith.addf %226, %251 : vector<8x192xf32>
    %c0_100 = arith.constant 0 : index
    %c52_101 = arith.constant 52 : index
    %253 = vector.load %arg2[%c0_100, %c52_101] : memref<8x260xf32, #tpu.memory_space<vmem>>, vector<8x192xf32>
    %c0_102 = arith.constant 0 : index
    %c57 = arith.constant 57 : index
    %254 = vector.load %arg3[%c0_102, %c57] : memref<8x75xf32, #tpu.memory_space<vmem>>, vector<8x1xf32>
    %255 = vector.broadcast %254 : vector<8x1xf32> to vector<8x192xf32>
    %256 = arith.mulf %255, %253 : vector<8x192xf32>
    %257 = arith.addf %231, %256 : vector<8x192xf32>
    %c0_103 = arith.constant 0 : index
    %c58 = arith.constant 58 : index
    %258 = vector.load %arg3[%c0_103, %c58] : memref<8x75xf32, #tpu.memory_space<vmem>>, vector<8x1xf32>
    %259 = vector.broadcast %258 : vector<8x1xf32> to vector<8x192xf32>
    %260 = arith.mulf %259, %253 : vector<8x192xf32>
    %261 = arith.addf %235, %260 : vector<8x192xf32>
    %c0_104 = arith.constant 0 : index
    %c59 = arith.constant 59 : index
    %262 = vector.load %arg3[%c0_104, %c59] : memref<8x75xf32, #tpu.memory_space<vmem>>, vector<8x1xf32>
    %263 = vector.broadcast %262 : vector<8x1xf32> to vector<8x192xf32>
    %264 = arith.mulf %263, %253 : vector<8x192xf32>
    %265 = arith.addf %239, %264 : vector<8x192xf32>
    %c0_105 = arith.constant 0 : index
    %c64 = arith.constant 64 : index
    %266 = vector.load %arg2[%c0_105, %c64] : memref<8x260xf32, #tpu.memory_space<vmem>>, vector<8x192xf32>
    %c0_106 = arith.constant 0 : index
    %c60 = arith.constant 60 : index
    %267 = vector.load %arg3[%c0_106, %c60] : memref<8x75xf32, #tpu.memory_space<vmem>>, vector<8x1xf32>
    %268 = vector.broadcast %267 : vector<8x1xf32> to vector<8x192xf32>
    %269 = arith.mulf %268, %266 : vector<8x192xf32>
    %270 = arith.addf %244, %269 : vector<8x192xf32>
    %c0_107 = arith.constant 0 : index
    %c61 = arith.constant 61 : index
    %271 = vector.load %arg3[%c0_107, %c61] : memref<8x75xf32, #tpu.memory_space<vmem>>, vector<8x1xf32>
    %272 = vector.broadcast %271 : vector<8x1xf32> to vector<8x192xf32>
    %273 = arith.mulf %272, %266 : vector<8x192xf32>
    %274 = arith.addf %248, %273 : vector<8x192xf32>
    %c0_108 = arith.constant 0 : index
    %c62 = arith.constant 62 : index
    %275 = vector.load %arg3[%c0_108, %c62] : memref<8x75xf32, #tpu.memory_space<vmem>>, vector<8x1xf32>
    %276 = vector.broadcast %275 : vector<8x1xf32> to vector<8x192xf32>
    %277 = arith.mulf %276, %266 : vector<8x192xf32>
    %278 = arith.addf %252, %277 : vector<8x192xf32>
    %c0_109 = arith.constant 0 : index
    %c65 = arith.constant 65 : index
    %279 = vector.load %arg2[%c0_109, %c65] : memref<8x260xf32, #tpu.memory_space<vmem>>, vector<8x192xf32>
    %c0_110 = arith.constant 0 : index
    %c63 = arith.constant 63 : index
    %280 = vector.load %arg3[%c0_110, %c63] : memref<8x75xf32, #tpu.memory_space<vmem>>, vector<8x1xf32>
    %281 = vector.broadcast %280 : vector<8x1xf32> to vector<8x192xf32>
    %282 = arith.mulf %281, %279 : vector<8x192xf32>
    %283 = arith.addf %257, %282 : vector<8x192xf32>
    %c0_111 = arith.constant 0 : index
    %c64_112 = arith.constant 64 : index
    %284 = vector.load %arg3[%c0_111, %c64_112] : memref<8x75xf32, #tpu.memory_space<vmem>>, vector<8x1xf32>
    %285 = vector.broadcast %284 : vector<8x1xf32> to vector<8x192xf32>
    %286 = arith.mulf %285, %279 : vector<8x192xf32>
    %287 = arith.addf %261, %286 : vector<8x192xf32>
    %c0_113 = arith.constant 0 : index
    %c65_114 = arith.constant 65 : index
    %288 = vector.load %arg3[%c0_113, %c65_114] : memref<8x75xf32, #tpu.memory_space<vmem>>, vector<8x1xf32>
    %289 = vector.broadcast %288 : vector<8x1xf32> to vector<8x192xf32>
    %290 = arith.mulf %289, %279 : vector<8x192xf32>
    %291 = arith.addf %265, %290 : vector<8x192xf32>
    %c0_115 = arith.constant 0 : index
    %c66 = arith.constant 66 : index
    %292 = vector.load %arg2[%c0_115, %c66] : memref<8x260xf32, #tpu.memory_space<vmem>>, vector<8x192xf32>
    %c0_116 = arith.constant 0 : index
    %c66_117 = arith.constant 66 : index
    %293 = vector.load %arg3[%c0_116, %c66_117] : memref<8x75xf32, #tpu.memory_space<vmem>>, vector<8x1xf32>
    %294 = vector.broadcast %293 : vector<8x1xf32> to vector<8x192xf32>
    %295 = arith.mulf %294, %292 : vector<8x192xf32>
    %296 = arith.addf %270, %295 : vector<8x192xf32>
    %c0_118 = arith.constant 0 : index
    %c67 = arith.constant 67 : index
    %297 = vector.load %arg3[%c0_118, %c67] : memref<8x75xf32, #tpu.memory_space<vmem>>, vector<8x1xf32>
    %298 = vector.broadcast %297 : vector<8x1xf32> to vector<8x192xf32>
    %299 = arith.mulf %298, %292 : vector<8x192xf32>
    %300 = arith.addf %274, %299 : vector<8x192xf32>
    %c0_119 = arith.constant 0 : index
    %c68 = arith.constant 68 : index
    %301 = vector.load %arg3[%c0_119, %c68] : memref<8x75xf32, #tpu.memory_space<vmem>>, vector<8x1xf32>
    %302 = vector.broadcast %301 : vector<8x1xf32> to vector<8x192xf32>
    %303 = arith.mulf %302, %292 : vector<8x192xf32>
    %304 = arith.addf %278, %303 : vector<8x192xf32>
    %c0_120 = arith.constant 0 : index
    %c67_121 = arith.constant 67 : index
    %305 = vector.load %arg2[%c0_120, %c67_121] : memref<8x260xf32, #tpu.memory_space<vmem>>, vector<8x192xf32>
    %c0_122 = arith.constant 0 : index
    %c69 = arith.constant 69 : index
    %306 = vector.load %arg3[%c0_122, %c69] : memref<8x75xf32, #tpu.memory_space<vmem>>, vector<8x1xf32>
    %307 = vector.broadcast %306 : vector<8x1xf32> to vector<8x192xf32>
    %308 = arith.mulf %307, %305 : vector<8x192xf32>
    %309 = arith.addf %283, %308 : vector<8x192xf32>
    %c0_123 = arith.constant 0 : index
    %c70 = arith.constant 70 : index
    %310 = vector.load %arg3[%c0_123, %c70] : memref<8x75xf32, #tpu.memory_space<vmem>>, vector<8x1xf32>
    %311 = vector.broadcast %310 : vector<8x1xf32> to vector<8x192xf32>
    %312 = arith.mulf %311, %305 : vector<8x192xf32>
    %313 = arith.addf %287, %312 : vector<8x192xf32>
    %c0_124 = arith.constant 0 : index
    %c71 = arith.constant 71 : index
    %314 = vector.load %arg3[%c0_124, %c71] : memref<8x75xf32, #tpu.memory_space<vmem>>, vector<8x1xf32>
    %315 = vector.broadcast %314 : vector<8x1xf32> to vector<8x192xf32>
    %316 = arith.mulf %315, %305 : vector<8x192xf32>
    %317 = arith.addf %291, %316 : vector<8x192xf32>
    %c0_125 = arith.constant 0 : index
    %c68_126 = arith.constant 68 : index
    %318 = vector.load %arg2[%c0_125, %c68_126] : memref<8x260xf32, #tpu.memory_space<vmem>>, vector<8x192xf32>
    %c0_127 = arith.constant 0 : index
    %c72 = arith.constant 72 : index
    %319 = vector.load %arg3[%c0_127, %c72] : memref<8x75xf32, #tpu.memory_space<vmem>>, vector<8x1xf32>
    %320 = vector.broadcast %319 : vector<8x1xf32> to vector<8x192xf32>
    %321 = arith.mulf %320, %318 : vector<8x192xf32>
    %322 = arith.addf %296, %321 : vector<8x192xf32>
    %c0_128 = arith.constant 0 : index
    %c73 = arith.constant 73 : index
    %323 = vector.load %arg3[%c0_128, %c73] : memref<8x75xf32, #tpu.memory_space<vmem>>, vector<8x1xf32>
    %324 = vector.broadcast %323 : vector<8x1xf32> to vector<8x192xf32>
    %325 = arith.mulf %324, %318 : vector<8x192xf32>
    %326 = arith.addf %300, %325 : vector<8x192xf32>
    %c0_129 = arith.constant 0 : index
    %c74 = arith.constant 74 : index
    %327 = vector.load %arg3[%c0_129, %c74] : memref<8x75xf32, #tpu.memory_space<vmem>>, vector<8x1xf32>
    %328 = vector.broadcast %327 : vector<8x1xf32> to vector<8x192xf32>
    %329 = arith.mulf %328, %318 : vector<8x192xf32>
    %330 = arith.addf %304, %329 : vector<8x192xf32>
    %331 = arith.addf %322, %309 : vector<8x192xf32>
    %332 = vector.extract_strided_slice %331 {offsets = [0, 0], sizes = [2, 192], strides = [1, 1]} : vector<8x192xf32> to vector<2x192xf32>
    %333 = vector.extract_strided_slice %331 {offsets = [2, 0], sizes = [2, 192], strides = [1, 1]} : vector<8x192xf32> to vector<2x192xf32>
    %334 = arith.addf %332, %333 : vector<2x192xf32>
    %335 = vector.extract_strided_slice %331 {offsets = [4, 0], sizes = [2, 192], strides = [1, 1]} : vector<8x192xf32> to vector<2x192xf32>
    %336 = arith.addf %334, %335 : vector<2x192xf32>
    %337 = vector.extract_strided_slice %331 {offsets = [6, 0], sizes = [2, 192], strides = [1, 1]} : vector<8x192xf32> to vector<2x192xf32>
    %338 = arith.addf %336, %337 : vector<2x192xf32>
    %c0_130 = arith.constant 0 : index
    %339 = memref.load %arg1[%c0_130] : memref<3xf32, #tpu.memory_space<smem>>
    %340 = vector.broadcast %339 : f32 to vector<2x192xf32>
    %341 = arith.addf %338, %340 : vector<2x192xf32>
    %342 = vector.extract_strided_slice %341 {offsets = [0, 0], sizes = [2, 12], strides = [1, 1]} : vector<2x192xf32> to vector<2x12xf32>
    %c0_131 = arith.constant 0 : index
    %c0_132 = arith.constant 0 : index
    %c0_133 = arith.constant 0 : index
    %c0_134 = arith.constant 0 : index
    %343 = vector.load %arg4[%c0_131, %c0_132, %c0_133, %c0_134] : memref<2x3x12x12xf32, #tpu.memory_space<vmem>>, vector<2x1x1x12xf32>
    %344 = vector.shape_cast %343 : vector<2x1x1x12xf32> to vector<2x12xf32>
    %345 = vector.shape_cast %342 : vector<2x12xf32> to vector<2x1x1x12xf32>
    tpu.vector_store %arg4[%c0_131, %c0_132, %c0_133, %c0_134], %345 {strides = array<i32>} : memref<2x3x12x12xf32, #tpu.memory_space<vmem>>, vector<2x1x1x12xf32>,
    %346 = vector.extract_strided_slice %341 {offsets = [0, 16], sizes = [2, 12], strides = [1, 1]} : vector<2x192xf32> to vector<2x12xf32>
    %c0_135 = arith.constant 0 : index
    %c0_136 = arith.constant 0 : index
    %c1_137 = arith.constant 1 : index
    %c0_138 = arith.constant 0 : index
    %347 = vector.load %arg4[%c0_135, %c0_136, %c1_137, %c0_138] : memref<2x3x12x12xf32, #tpu.memory_space<vmem>>, vector<2x1x1x12xf32>
    %348 = vector.shape_cast %347 : vector<2x1x1x12xf32> to vector<2x12xf32>
    %349 = vector.shape_cast %346 : vector<2x12xf32> to vector<2x1x1x12xf32>
    tpu.vector_store %arg4[%c0_135, %c0_136, %c1_137, %c0_138], %349 {strides = array<i32>} : memref<2x3x12x12xf32, #tpu.memory_space<vmem>>, vector<2x1x1x12xf32>,
    %350 = vector.extract_strided_slice %341 {offsets = [0, 32], sizes = [2, 12], strides = [1, 1]} : vector<2x192xf32> to vector<2x12xf32>
    %c0_139 = arith.constant 0 : index
    %c0_140 = arith.constant 0 : index
    %c2_141 = arith.constant 2 : index
    %c0_142 = arith.constant 0 : index
    %351 = vector.load %arg4[%c0_139, %c0_140, %c2_141, %c0_142] : memref<2x3x12x12xf32, #tpu.memory_space<vmem>>, vector<2x1x1x12xf32>
    %352 = vector.shape_cast %351 : vector<2x1x1x12xf32> to vector<2x12xf32>
    %353 = vector.shape_cast %350 : vector<2x12xf32> to vector<2x1x1x12xf32>
    tpu.vector_store %arg4[%c0_139, %c0_140, %c2_141, %c0_142], %353 {strides = array<i32>} : memref<2x3x12x12xf32, #tpu.memory_space<vmem>>, vector<2x1x1x12xf32>,
    %354 = vector.extract_strided_slice %341 {offsets = [0, 48], sizes = [2, 12], strides = [1, 1]} : vector<2x192xf32> to vector<2x12xf32>
    %c0_143 = arith.constant 0 : index
    %c0_144 = arith.constant 0 : index
    %c3_145 = arith.constant 3 : index
    %c0_146 = arith.constant 0 : index
    %355 = vector.load %arg4[%c0_143, %c0_144, %c3_145, %c0_146] : memref<2x3x12x12xf32, #tpu.memory_space<vmem>>, vector<2x1x1x12xf32>
    %356 = vector.shape_cast %355 : vector<2x1x1x12xf32> to vector<2x12xf32>
    %357 = vector.shape_cast %354 : vector<2x12xf32> to vector<2x1x1x12xf32>
    tpu.vector_store %arg4[%c0_143, %c0_144, %c3_145, %c0_146], %357 {strides = array<i32>} : memref<2x3x12x12xf32, #tpu.memory_space<vmem>>, vector<2x1x1x12xf32>,
    %358 = vector.extract_strided_slice %341 {offsets = [0, 64], sizes = [2, 12], strides = [1, 1]} : vector<2x192xf32> to vector<2x12xf32>
    %c0_147 = arith.constant 0 : index
    %c0_148 = arith.constant 0 : index
    %c4_149 = arith.constant 4 : index
    %c0_150 = arith.constant 0 : index
    %359 = vector.load %arg4[%c0_147, %c0_148, %c4_149, %c0_150] : memref<2x3x12x12xf32, #tpu.memory_space<vmem>>, vector<2x1x1x12xf32>
    %360 = vector.shape_cast %359 : vector<2x1x1x12xf32> to vector<2x12xf32>
    %361 = vector.shape_cast %358 : vector<2x12xf32> to vector<2x1x1x12xf32>
    tpu.vector_store %arg4[%c0_147, %c0_148, %c4_149, %c0_150], %361 {strides = array<i32>} : memref<2x3x12x12xf32, #tpu.memory_space<vmem>>, vector<2x1x1x12xf32>,
    %362 = vector.extract_strided_slice %341 {offsets = [0, 80], sizes = [2, 12], strides = [1, 1]} : vector<2x192xf32> to vector<2x12xf32>
    %c0_151 = arith.constant 0 : index
    %c0_152 = arith.constant 0 : index
    %c5_153 = arith.constant 5 : index
    %c0_154 = arith.constant 0 : index
    %363 = vector.load %arg4[%c0_151, %c0_152, %c5_153, %c0_154] : memref<2x3x12x12xf32, #tpu.memory_space<vmem>>, vector<2x1x1x12xf32>
    %364 = vector.shape_cast %363 : vector<2x1x1x12xf32> to vector<2x12xf32>
    %365 = vector.shape_cast %362 : vector<2x12xf32> to vector<2x1x1x12xf32>
    tpu.vector_store %arg4[%c0_151, %c0_152, %c5_153, %c0_154], %365 {strides = array<i32>} : memref<2x3x12x12xf32, #tpu.memory_space<vmem>>, vector<2x1x1x12xf32>,
    %366 = vector.extract_strided_slice %341 {offsets = [0, 96], sizes = [2, 12], strides = [1, 1]} : vector<2x192xf32> to vector<2x12xf32>
    %c0_155 = arith.constant 0 : index
    %c0_156 = arith.constant 0 : index
    %c6_157 = arith.constant 6 : index
    %c0_158 = arith.constant 0 : index
    %367 = vector.load %arg4[%c0_155, %c0_156, %c6_157, %c0_158] : memref<2x3x12x12xf32, #tpu.memory_space<vmem>>, vector<2x1x1x12xf32>
    %368 = vector.shape_cast %367 : vector<2x1x1x12xf32> to vector<2x12xf32>
    %369 = vector.shape_cast %366 : vector<2x12xf32> to vector<2x1x1x12xf32>
    tpu.vector_store %arg4[%c0_155, %c0_156, %c6_157, %c0_158], %369 {strides = array<i32>} : memref<2x3x12x12xf32, #tpu.memory_space<vmem>>, vector<2x1x1x12xf32>,
    %370 = vector.extract_strided_slice %341 {offsets = [0, 112], sizes = [2, 12], strides = [1, 1]} : vector<2x192xf32> to vector<2x12xf32>
    %c0_159 = arith.constant 0 : index
    %c0_160 = arith.constant 0 : index
    %c7_161 = arith.constant 7 : index
    %c0_162 = arith.constant 0 : index
    %371 = vector.load %arg4[%c0_159, %c0_160, %c7_161, %c0_162] : memref<2x3x12x12xf32, #tpu.memory_space<vmem>>, vector<2x1x1x12xf32>
    %372 = vector.shape_cast %371 : vector<2x1x1x12xf32> to vector<2x12xf32>
    %373 = vector.shape_cast %370 : vector<2x12xf32> to vector<2x1x1x12xf32>
    tpu.vector_store %arg4[%c0_159, %c0_160, %c7_161, %c0_162], %373 {strides = array<i32>} : memref<2x3x12x12xf32, #tpu.memory_space<vmem>>, vector<2x1x1x12xf32>,
    %374 = vector.extract_strided_slice %341 {offsets = [0, 128], sizes = [2, 12], strides = [1, 1]} : vector<2x192xf32> to vector<2x12xf32>
    %c0_163 = arith.constant 0 : index
    %c0_164 = arith.constant 0 : index
    %c8_165 = arith.constant 8 : index
    %c0_166 = arith.constant 0 : index
    %375 = vector.load %arg4[%c0_163, %c0_164, %c8_165, %c0_166] : memref<2x3x12x12xf32, #tpu.memory_space<vmem>>, vector<2x1x1x12xf32>
    %376 = vector.shape_cast %375 : vector<2x1x1x12xf32> to vector<2x12xf32>
    %377 = vector.shape_cast %374 : vector<2x12xf32> to vector<2x1x1x12xf32>
    tpu.vector_store %arg4[%c0_163, %c0_164, %c8_165, %c0_166], %377 {strides = array<i32>} : memref<2x3x12x12xf32, #tpu.memory_space<vmem>>, vector<2x1x1x12xf32>,
    %378 = vector.extract_strided_slice %341 {offsets = [0, 144], sizes = [2, 12], strides = [1, 1]} : vector<2x192xf32> to vector<2x12xf32>
    %c0_167 = arith.constant 0 : index
    %c0_168 = arith.constant 0 : index
    %c9_169 = arith.constant 9 : index
    %c0_170 = arith.constant 0 : index
    %379 = vector.load %arg4[%c0_167, %c0_168, %c9_169, %c0_170] : memref<2x3x12x12xf32, #tpu.memory_space<vmem>>, vector<2x1x1x12xf32>
    %380 = vector.shape_cast %379 : vector<2x1x1x12xf32> to vector<2x12xf32>
    %381 = vector.shape_cast %378 : vector<2x12xf32> to vector<2x1x1x12xf32>
    tpu.vector_store %arg4[%c0_167, %c0_168, %c9_169, %c0_170], %381 {strides = array<i32>} : memref<2x3x12x12xf32, #tpu.memory_space<vmem>>, vector<2x1x1x12xf32>,
    %382 = vector.extract_strided_slice %341 {offsets = [0, 160], sizes = [2, 12], strides = [1, 1]} : vector<2x192xf32> to vector<2x12xf32>
    %c0_171 = arith.constant 0 : index
    %c0_172 = arith.constant 0 : index
    %c10_173 = arith.constant 10 : index
    %c0_174 = arith.constant 0 : index
    %383 = vector.load %arg4[%c0_171, %c0_172, %c10_173, %c0_174] : memref<2x3x12x12xf32, #tpu.memory_space<vmem>>, vector<2x1x1x12xf32>
    %384 = vector.shape_cast %383 : vector<2x1x1x12xf32> to vector<2x12xf32>
    %385 = vector.shape_cast %382 : vector<2x12xf32> to vector<2x1x1x12xf32>
    tpu.vector_store %arg4[%c0_171, %c0_172, %c10_173, %c0_174], %385 {strides = array<i32>} : memref<2x3x12x12xf32, #tpu.memory_space<vmem>>, vector<2x1x1x12xf32>,
    %386 = vector.extract_strided_slice %341 {offsets = [0, 176], sizes = [2, 12], strides = [1, 1]} : vector<2x192xf32> to vector<2x12xf32>
    %c0_175 = arith.constant 0 : index
    %c0_176 = arith.constant 0 : index
    %c11_177 = arith.constant 11 : index
    %c0_178 = arith.constant 0 : index
    %387 = vector.load %arg4[%c0_175, %c0_176, %c11_177, %c0_178] : memref<2x3x12x12xf32, #tpu.memory_space<vmem>>, vector<2x1x1x12xf32>
    %388 = vector.shape_cast %387 : vector<2x1x1x12xf32> to vector<2x12xf32>
    %389 = vector.shape_cast %386 : vector<2x12xf32> to vector<2x1x1x12xf32>
    tpu.vector_store %arg4[%c0_175, %c0_176, %c11_177, %c0_178], %389 {strides = array<i32>} : memref<2x3x12x12xf32, #tpu.memory_space<vmem>>, vector<2x1x1x12xf32>,
    %390 = arith.addf %326, %313 : vector<8x192xf32>
    %391 = vector.extract_strided_slice %390 {offsets = [0, 0], sizes = [2, 192], strides = [1, 1]} : vector<8x192xf32> to vector<2x192xf32>
    %392 = vector.extract_strided_slice %390 {offsets = [2, 0], sizes = [2, 192], strides = [1, 1]} : vector<8x192xf32> to vector<2x192xf32>
    %393 = arith.addf %391, %392 : vector<2x192xf32>
    %394 = vector.extract_strided_slice %390 {offsets = [4, 0], sizes = [2, 192], strides = [1, 1]} : vector<8x192xf32> to vector<2x192xf32>
    %395 = arith.addf %393, %394 : vector<2x192xf32>
    %396 = vector.extract_strided_slice %390 {offsets = [6, 0], sizes = [2, 192], strides = [1, 1]} : vector<8x192xf32> to vector<2x192xf32>
    %397 = arith.addf %395, %396 : vector<2x192xf32>
    %c1_179 = arith.constant 1 : index
    %398 = memref.load %arg1[%c1_179] : memref<3xf32, #tpu.memory_space<smem>>
    %399 = vector.broadcast %398 : f32 to vector<2x192xf32>
    %400 = arith.addf %397, %399 : vector<2x192xf32>
    %401 = vector.extract_strided_slice %400 {offsets = [0, 0], sizes = [2, 12], strides = [1, 1]} : vector<2x192xf32> to vector<2x12xf32>
    %c0_180 = arith.constant 0 : index
    %c1_181 = arith.constant 1 : index
    %c0_182 = arith.constant 0 : index
    %c0_183 = arith.constant 0 : index
    %402 = vector.load %arg4[%c0_180, %c1_181, %c0_182, %c0_183] : memref<2x3x12x12xf32, #tpu.memory_space<vmem>>, vector<2x1x1x12xf32>
    %403 = vector.shape_cast %402 : vector<2x1x1x12xf32> to vector<2x12xf32>
    %404 = vector.shape_cast %401 : vector<2x12xf32> to vector<2x1x1x12xf32>
    tpu.vector_store %arg4[%c0_180, %c1_181, %c0_182, %c0_183], %404 {strides = array<i32>} : memref<2x3x12x12xf32, #tpu.memory_space<vmem>>, vector<2x1x1x12xf32>,
    %405 = vector.extract_strided_slice %400 {offsets = [0, 16], sizes = [2, 12], strides = [1, 1]} : vector<2x192xf32> to vector<2x12xf32>
    %c0_184 = arith.constant 0 : index
    %c1_185 = arith.constant 1 : index
    %c1_186 = arith.constant 1 : index
    %c0_187 = arith.constant 0 : index
    %406 = vector.load %arg4[%c0_184, %c1_185, %c1_186, %c0_187] : memref<2x3x12x12xf32, #tpu.memory_space<vmem>>, vector<2x1x1x12xf32>
    %407 = vector.shape_cast %406 : vector<2x1x1x12xf32> to vector<2x12xf32>
    %408 = vector.shape_cast %405 : vector<2x12xf32> to vector<2x1x1x12xf32>
    tpu.vector_store %arg4[%c0_184, %c1_185, %c1_186, %c0_187], %408 {strides = array<i32>} : memref<2x3x12x12xf32, #tpu.memory_space<vmem>>, vector<2x1x1x12xf32>,
    %409 = vector.extract_strided_slice %400 {offsets = [0, 32], sizes = [2, 12], strides = [1, 1]} : vector<2x192xf32> to vector<2x12xf32>
    %c0_188 = arith.constant 0 : index
    %c1_189 = arith.constant 1 : index
    %c2_190 = arith.constant 2 : index
    %c0_191 = arith.constant 0 : index
    %410 = vector.load %arg4[%c0_188, %c1_189, %c2_190, %c0_191] : memref<2x3x12x12xf32, #tpu.memory_space<vmem>>, vector<2x1x1x12xf32>
    %411 = vector.shape_cast %410 : vector<2x1x1x12xf32> to vector<2x12xf32>
    %412 = vector.shape_cast %409 : vector<2x12xf32> to vector<2x1x1x12xf32>
    tpu.vector_store %arg4[%c0_188, %c1_189, %c2_190, %c0_191], %412 {strides = array<i32>} : memref<2x3x12x12xf32, #tpu.memory_space<vmem>>, vector<2x1x1x12xf32>,
    %413 = vector.extract_strided_slice %400 {offsets = [0, 48], sizes = [2, 12], strides = [1, 1]} : vector<2x192xf32> to vector<2x12xf32>
    %c0_192 = arith.constant 0 : index
    %c1_193 = arith.constant 1 : index
    %c3_194 = arith.constant 3 : index
    %c0_195 = arith.constant 0 : index
    %414 = vector.load %arg4[%c0_192, %c1_193, %c3_194, %c0_195] : memref<2x3x12x12xf32, #tpu.memory_space<vmem>>, vector<2x1x1x12xf32>
    %415 = vector.shape_cast %414 : vector<2x1x1x12xf32> to vector<2x12xf32>
    %416 = vector.shape_cast %413 : vector<2x12xf32> to vector<2x1x1x12xf32>
    tpu.vector_store %arg4[%c0_192, %c1_193, %c3_194, %c0_195], %416 {strides = array<i32>} : memref<2x3x12x12xf32, #tpu.memory_space<vmem>>, vector<2x1x1x12xf32>,
    %417 = vector.extract_strided_slice %400 {offsets = [0, 64], sizes = [2, 12], strides = [1, 1]} : vector<2x192xf32> to vector<2x12xf32>
    %c0_196 = arith.constant 0 : index
    %c1_197 = arith.constant 1 : index
    %c4_198 = arith.constant 4 : index
    %c0_199 = arith.constant 0 : index
    %418 = vector.load %arg4[%c0_196, %c1_197, %c4_198, %c0_199] : memref<2x3x12x12xf32, #tpu.memory_space<vmem>>, vector<2x1x1x12xf32>
    %419 = vector.shape_cast %418 : vector<2x1x1x12xf32> to vector<2x12xf32>
    %420 = vector.shape_cast %417 : vector<2x12xf32> to vector<2x1x1x12xf32>
    tpu.vector_store %arg4[%c0_196, %c1_197, %c4_198, %c0_199], %420 {strides = array<i32>} : memref<2x3x12x12xf32, #tpu.memory_space<vmem>>, vector<2x1x1x12xf32>,
    %421 = vector.extract_strided_slice %400 {offsets = [0, 80], sizes = [2, 12], strides = [1, 1]} : vector<2x192xf32> to vector<2x12xf32>
    %c0_200 = arith.constant 0 : index
    %c1_201 = arith.constant 1 : index
    %c5_202 = arith.constant 5 : index
    %c0_203 = arith.constant 0 : index
    %422 = vector.load %arg4[%c0_200, %c1_201, %c5_202, %c0_203] : memref<2x3x12x12xf32, #tpu.memory_space<vmem>>, vector<2x1x1x12xf32>
    %423 = vector.shape_cast %422 : vector<2x1x1x12xf32> to vector<2x12xf32>
    %424 = vector.shape_cast %421 : vector<2x12xf32> to vector<2x1x1x12xf32>
    tpu.vector_store %arg4[%c0_200, %c1_201, %c5_202, %c0_203], %424 {strides = array<i32>} : memref<2x3x12x12xf32, #tpu.memory_space<vmem>>, vector<2x1x1x12xf32>,
    %425 = vector.extract_strided_slice %400 {offsets = [0, 96], sizes = [2, 12], strides = [1, 1]} : vector<2x192xf32> to vector<2x12xf32>
    %c0_204 = arith.constant 0 : index
    %c1_205 = arith.constant 1 : index
    %c6_206 = arith.constant 6 : index
    %c0_207 = arith.constant 0 : index
    %426 = vector.load %arg4[%c0_204, %c1_205, %c6_206, %c0_207] : memref<2x3x12x12xf32, #tpu.memory_space<vmem>>, vector<2x1x1x12xf32>
    %427 = vector.shape_cast %426 : vector<2x1x1x12xf32> to vector<2x12xf32>
    %428 = vector.shape_cast %425 : vector<2x12xf32> to vector<2x1x1x12xf32>
    tpu.vector_store %arg4[%c0_204, %c1_205, %c6_206, %c0_207], %428 {strides = array<i32>} : memref<2x3x12x12xf32, #tpu.memory_space<vmem>>, vector<2x1x1x12xf32>,
    %429 = vector.extract_strided_slice %400 {offsets = [0, 112], sizes = [2, 12], strides = [1, 1]} : vector<2x192xf32> to vector<2x12xf32>
    %c0_208 = arith.constant 0 : index
    %c1_209 = arith.constant 1 : index
    %c7_210 = arith.constant 7 : index
    %c0_211 = arith.constant 0 : index
    %430 = vector.load %arg4[%c0_208, %c1_209, %c7_210, %c0_211] : memref<2x3x12x12xf32, #tpu.memory_space<vmem>>, vector<2x1x1x12xf32>
    %431 = vector.shape_cast %430 : vector<2x1x1x12xf32> to vector<2x12xf32>
    %432 = vector.shape_cast %429 : vector<2x12xf32> to vector<2x1x1x12xf32>
    tpu.vector_store %arg4[%c0_208, %c1_209, %c7_210, %c0_211], %432 {strides = array<i32>} : memref<2x3x12x12xf32, #tpu.memory_space<vmem>>, vector<2x1x1x12xf32>,
    %433 = vector.extract_strided_slice %400 {offsets = [0, 128], sizes = [2, 12], strides = [1, 1]} : vector<2x192xf32> to vector<2x12xf32>
    %c0_212 = arith.constant 0 : index
    %c1_213 = arith.constant 1 : index
    %c8_214 = arith.constant 8 : index
    %c0_215 = arith.constant 0 : index
    %434 = vector.load %arg4[%c0_212, %c1_213, %c8_214, %c0_215] : memref<2x3x12x12xf32, #tpu.memory_space<vmem>>, vector<2x1x1x12xf32>
    %435 = vector.shape_cast %434 : vector<2x1x1x12xf32> to vector<2x12xf32>
    %436 = vector.shape_cast %433 : vector<2x12xf32> to vector<2x1x1x12xf32>
    tpu.vector_store %arg4[%c0_212, %c1_213, %c8_214, %c0_215], %436 {strides = array<i32>} : memref<2x3x12x12xf32, #tpu.memory_space<vmem>>, vector<2x1x1x12xf32>,
    %437 = vector.extract_strided_slice %400 {offsets = [0, 144], sizes = [2, 12], strides = [1, 1]} : vector<2x192xf32> to vector<2x12xf32>
    %c0_216 = arith.constant 0 : index
    %c1_217 = arith.constant 1 : index
    %c9_218 = arith.constant 9 : index
    %c0_219 = arith.constant 0 : index
    %438 = vector.load %arg4[%c0_216, %c1_217, %c9_218, %c0_219] : memref<2x3x12x12xf32, #tpu.memory_space<vmem>>, vector<2x1x1x12xf32>
    %439 = vector.shape_cast %438 : vector<2x1x1x12xf32> to vector<2x12xf32>
    %440 = vector.shape_cast %437 : vector<2x12xf32> to vector<2x1x1x12xf32>
    tpu.vector_store %arg4[%c0_216, %c1_217, %c9_218, %c0_219], %440 {strides = array<i32>} : memref<2x3x12x12xf32, #tpu.memory_space<vmem>>, vector<2x1x1x12xf32>,
    %441 = vector.extract_strided_slice %400 {offsets = [0, 160], sizes = [2, 12], strides = [1, 1]} : vector<2x192xf32> to vector<2x12xf32>
    %c0_220 = arith.constant 0 : index
    %c1_221 = arith.constant 1 : index
    %c10_222 = arith.constant 10 : index
    %c0_223 = arith.constant 0 : index
    %442 = vector.load %arg4[%c0_220, %c1_221, %c10_222, %c0_223] : memref<2x3x12x12xf32, #tpu.memory_space<vmem>>, vector<2x1x1x12xf32>
    %443 = vector.shape_cast %442 : vector<2x1x1x12xf32> to vector<2x12xf32>
    %444 = vector.shape_cast %441 : vector<2x12xf32> to vector<2x1x1x12xf32>
    tpu.vector_store %arg4[%c0_220, %c1_221, %c10_222, %c0_223], %444 {strides = array<i32>} : memref<2x3x12x12xf32, #tpu.memory_space<vmem>>, vector<2x1x1x12xf32>,
    %445 = vector.extract_strided_slice %400 {offsets = [0, 176], sizes = [2, 12], strides = [1, 1]} : vector<2x192xf32> to vector<2x12xf32>
    %c0_224 = arith.constant 0 : index
    %c1_225 = arith.constant 1 : index
    %c11_226 = arith.constant 11 : index
    %c0_227 = arith.constant 0 : index
    %446 = vector.load %arg4[%c0_224, %c1_225, %c11_226, %c0_227] : memref<2x3x12x12xf32, #tpu.memory_space<vmem>>, vector<2x1x1x12xf32>
    %447 = vector.shape_cast %446 : vector<2x1x1x12xf32> to vector<2x12xf32>
    %448 = vector.shape_cast %445 : vector<2x12xf32> to vector<2x1x1x12xf32>
    tpu.vector_store %arg4[%c0_224, %c1_225, %c11_226, %c0_227], %448 {strides = array<i32>} : memref<2x3x12x12xf32, #tpu.memory_space<vmem>>, vector<2x1x1x12xf32>,
    %449 = arith.addf %330, %317 : vector<8x192xf32>
    %450 = vector.extract_strided_slice %449 {offsets = [0, 0], sizes = [2, 192], strides = [1, 1]} : vector<8x192xf32> to vector<2x192xf32>
    %451 = vector.extract_strided_slice %449 {offsets = [2, 0], sizes = [2, 192], strides = [1, 1]} : vector<8x192xf32> to vector<2x192xf32>
    %452 = arith.addf %450, %451 : vector<2x192xf32>
    %453 = vector.extract_strided_slice %449 {offsets = [4, 0], sizes = [2, 192], strides = [1, 1]} : vector<8x192xf32> to vector<2x192xf32>
    %454 = arith.addf %452, %453 : vector<2x192xf32>
    %455 = vector.extract_strided_slice %449 {offsets = [6, 0], sizes = [2, 192], strides = [1, 1]} : vector<8x192xf32> to vector<2x192xf32>
    %456 = arith.addf %454, %455 : vector<2x192xf32>
    %c2_228 = arith.constant 2 : index
    %457 = memref.load %arg1[%c2_228] : memref<3xf32, #tpu.memory_space<smem>>
    %458 = vector.broadcast %457 : f32 to vector<2x192xf32>
    %459 = arith.addf %456, %458 : vector<2x192xf32>
    %460 = vector.extract_strided_slice %459 {offsets = [0, 0], sizes = [2, 12], strides = [1, 1]} : vector<2x192xf32> to vector<2x12xf32>
    %c0_229 = arith.constant 0 : index
    %c2_230 = arith.constant 2 : index
    %c0_231 = arith.constant 0 : index
    %c0_232 = arith.constant 0 : index
    %461 = vector.load %arg4[%c0_229, %c2_230, %c0_231, %c0_232] : memref<2x3x12x12xf32, #tpu.memory_space<vmem>>, vector<2x1x1x12xf32>
    %462 = vector.shape_cast %461 : vector<2x1x1x12xf32> to vector<2x12xf32>
    %463 = vector.shape_cast %460 : vector<2x12xf32> to vector<2x1x1x12xf32>
    tpu.vector_store %arg4[%c0_229, %c2_230, %c0_231, %c0_232], %463 {strides = array<i32>} : memref<2x3x12x12xf32, #tpu.memory_space<vmem>>, vector<2x1x1x12xf32>,
    %464 = vector.extract_strided_slice %459 {offsets = [0, 16], sizes = [2, 12], strides = [1, 1]} : vector<2x192xf32> to vector<2x12xf32>
    %c0_233 = arith.constant 0 : index
    %c2_234 = arith.constant 2 : index
    %c1_235 = arith.constant 1 : index
    %c0_236 = arith.constant 0 : index
    %465 = vector.load %arg4[%c0_233, %c2_234, %c1_235, %c0_236] : memref<2x3x12x12xf32, #tpu.memory_space<vmem>>, vector<2x1x1x12xf32>
    %466 = vector.shape_cast %465 : vector<2x1x1x12xf32> to vector<2x12xf32>
    %467 = vector.shape_cast %464 : vector<2x12xf32> to vector<2x1x1x12xf32>
    tpu.vector_store %arg4[%c0_233, %c2_234, %c1_235, %c0_236], %467 {strides = array<i32>} : memref<2x3x12x12xf32, #tpu.memory_space<vmem>>, vector<2x1x1x12xf32>,
    %468 = vector.extract_strided_slice %459 {offsets = [0, 32], sizes = [2, 12], strides = [1, 1]} : vector<2x192xf32> to vector<2x12xf32>
    %c0_237 = arith.constant 0 : index
    %c2_238 = arith.constant 2 : index
    %c2_239 = arith.constant 2 : index
    %c0_240 = arith.constant 0 : index
    %469 = vector.load %arg4[%c0_237, %c2_238, %c2_239, %c0_240] : memref<2x3x12x12xf32, #tpu.memory_space<vmem>>, vector<2x1x1x12xf32>
    %470 = vector.shape_cast %469 : vector<2x1x1x12xf32> to vector<2x12xf32>
    %471 = vector.shape_cast %468 : vector<2x12xf32> to vector<2x1x1x12xf32>
    tpu.vector_store %arg4[%c0_237, %c2_238, %c2_239, %c0_240], %471 {strides = array<i32>} : memref<2x3x12x12xf32, #tpu.memory_space<vmem>>, vector<2x1x1x12xf32>,
    %472 = vector.extract_strided_slice %459 {offsets = [0, 48], sizes = [2, 12], strides = [1, 1]} : vector<2x192xf32> to vector<2x12xf32>
    %c0_241 = arith.constant 0 : index
    %c2_242 = arith.constant 2 : index
    %c3_243 = arith.constant 3 : index
    %c0_244 = arith.constant 0 : index
    %473 = vector.load %arg4[%c0_241, %c2_242, %c3_243, %c0_244] : memref<2x3x12x12xf32, #tpu.memory_space<vmem>>, vector<2x1x1x12xf32>
    %474 = vector.shape_cast %473 : vector<2x1x1x12xf32> to vector<2x12xf32>
    %475 = vector.shape_cast %472 : vector<2x12xf32> to vector<2x1x1x12xf32>
    tpu.vector_store %arg4[%c0_241, %c2_242, %c3_243, %c0_244], %475 {strides = array<i32>} : memref<2x3x12x12xf32, #tpu.memory_space<vmem>>, vector<2x1x1x12xf32>,
    %476 = vector.extract_strided_slice %459 {offsets = [0, 64], sizes = [2, 12], strides = [1, 1]} : vector<2x192xf32> to vector<2x12xf32>
    %c0_245 = arith.constant 0 : index
    %c2_246 = arith.constant 2 : index
    %c4_247 = arith.constant 4 : index
    %c0_248 = arith.constant 0 : index
    %477 = vector.load %arg4[%c0_245, %c2_246, %c4_247, %c0_248] : memref<2x3x12x12xf32, #tpu.memory_space<vmem>>, vector<2x1x1x12xf32>
    %478 = vector.shape_cast %477 : vector<2x1x1x12xf32> to vector<2x12xf32>
    %479 = vector.shape_cast %476 : vector<2x12xf32> to vector<2x1x1x12xf32>
    tpu.vector_store %arg4[%c0_245, %c2_246, %c4_247, %c0_248], %479 {strides = array<i32>} : memref<2x3x12x12xf32, #tpu.memory_space<vmem>>, vector<2x1x1x12xf32>,
    %480 = vector.extract_strided_slice %459 {offsets = [0, 80], sizes = [2, 12], strides = [1, 1]} : vector<2x192xf32> to vector<2x12xf32>
    %c0_249 = arith.constant 0 : index
    %c2_250 = arith.constant 2 : index
    %c5_251 = arith.constant 5 : index
    %c0_252 = arith.constant 0 : index
    %481 = vector.load %arg4[%c0_249, %c2_250, %c5_251, %c0_252] : memref<2x3x12x12xf32, #tpu.memory_space<vmem>>, vector<2x1x1x12xf32>
    %482 = vector.shape_cast %481 : vector<2x1x1x12xf32> to vector<2x12xf32>
    %483 = vector.shape_cast %480 : vector<2x12xf32> to vector<2x1x1x12xf32>
    tpu.vector_store %arg4[%c0_249, %c2_250, %c5_251, %c0_252], %483 {strides = array<i32>} : memref<2x3x12x12xf32, #tpu.memory_space<vmem>>, vector<2x1x1x12xf32>,
    %484 = vector.extract_strided_slice %459 {offsets = [0, 96], sizes = [2, 12], strides = [1, 1]} : vector<2x192xf32> to vector<2x12xf32>
    %c0_253 = arith.constant 0 : index
    %c2_254 = arith.constant 2 : index
    %c6_255 = arith.constant 6 : index
    %c0_256 = arith.constant 0 : index
    %485 = vector.load %arg4[%c0_253, %c2_254, %c6_255, %c0_256] : memref<2x3x12x12xf32, #tpu.memory_space<vmem>>, vector<2x1x1x12xf32>
    %486 = vector.shape_cast %485 : vector<2x1x1x12xf32> to vector<2x12xf32>
    %487 = vector.shape_cast %484 : vector<2x12xf32> to vector<2x1x1x12xf32>
    tpu.vector_store %arg4[%c0_253, %c2_254, %c6_255, %c0_256], %487 {strides = array<i32>} : memref<2x3x12x12xf32, #tpu.memory_space<vmem>>, vector<2x1x1x12xf32>,
    %488 = vector.extract_strided_slice %459 {offsets = [0, 112], sizes = [2, 12], strides = [1, 1]} : vector<2x192xf32> to vector<2x12xf32>
    %c0_257 = arith.constant 0 : index
    %c2_258 = arith.constant 2 : index
    %c7_259 = arith.constant 7 : index
    %c0_260 = arith.constant 0 : index
    %489 = vector.load %arg4[%c0_257, %c2_258, %c7_259, %c0_260] : memref<2x3x12x12xf32, #tpu.memory_space<vmem>>, vector<2x1x1x12xf32>
    %490 = vector.shape_cast %489 : vector<2x1x1x12xf32> to vector<2x12xf32>
    %491 = vector.shape_cast %488 : vector<2x12xf32> to vector<2x1x1x12xf32>
    tpu.vector_store %arg4[%c0_257, %c2_258, %c7_259, %c0_260], %491 {strides = array<i32>} : memref<2x3x12x12xf32, #tpu.memory_space<vmem>>, vector<2x1x1x12xf32>,
    %492 = vector.extract_strided_slice %459 {offsets = [0, 128], sizes = [2, 12], strides = [1, 1]} : vector<2x192xf32> to vector<2x12xf32>
    %c0_261 = arith.constant 0 : index
    %c2_262 = arith.constant 2 : index
    %c8_263 = arith.constant 8 : index
    %c0_264 = arith.constant 0 : index
    %493 = vector.load %arg4[%c0_261, %c2_262, %c8_263, %c0_264] : memref<2x3x12x12xf32, #tpu.memory_space<vmem>>, vector<2x1x1x12xf32>
    %494 = vector.shape_cast %493 : vector<2x1x1x12xf32> to vector<2x12xf32>
    %495 = vector.shape_cast %492 : vector<2x12xf32> to vector<2x1x1x12xf32>
    tpu.vector_store %arg4[%c0_261, %c2_262, %c8_263, %c0_264], %495 {strides = array<i32>} : memref<2x3x12x12xf32, #tpu.memory_space<vmem>>, vector<2x1x1x12xf32>,
    %496 = vector.extract_strided_slice %459 {offsets = [0, 144], sizes = [2, 12], strides = [1, 1]} : vector<2x192xf32> to vector<2x12xf32>
    %c0_265 = arith.constant 0 : index
    %c2_266 = arith.constant 2 : index
    %c9_267 = arith.constant 9 : index
    %c0_268 = arith.constant 0 : index
    %497 = vector.load %arg4[%c0_265, %c2_266, %c9_267, %c0_268] : memref<2x3x12x12xf32, #tpu.memory_space<vmem>>, vector<2x1x1x12xf32>
    %498 = vector.shape_cast %497 : vector<2x1x1x12xf32> to vector<2x12xf32>
    %499 = vector.shape_cast %496 : vector<2x12xf32> to vector<2x1x1x12xf32>
    tpu.vector_store %arg4[%c0_265, %c2_266, %c9_267, %c0_268], %499 {strides = array<i32>} : memref<2x3x12x12xf32, #tpu.memory_space<vmem>>, vector<2x1x1x12xf32>,
    %500 = vector.extract_strided_slice %459 {offsets = [0, 160], sizes = [2, 12], strides = [1, 1]} : vector<2x192xf32> to vector<2x12xf32>
    %c0_269 = arith.constant 0 : index
    %c2_270 = arith.constant 2 : index
    %c10_271 = arith.constant 10 : index
    %c0_272 = arith.constant 0 : index
    %501 = vector.load %arg4[%c0_269, %c2_270, %c10_271, %c0_272] : memref<2x3x12x12xf32, #tpu.memory_space<vmem>>, vector<2x1x1x12xf32>
    %502 = vector.shape_cast %501 : vector<2x1x1x12xf32> to vector<2x12xf32>
    %503 = vector.shape_cast %500 : vector<2x12xf32> to vector<2x1x1x12xf32>
    tpu.vector_store %arg4[%c0_269, %c2_270, %c10_271, %c0_272], %503 {strides = array<i32>} : memref<2x3x12x12xf32, #tpu.memory_space<vmem>>, vector<2x1x1x12xf32>,
    %504 = vector.extract_strided_slice %459 {offsets = [0, 176], sizes = [2, 12], strides = [1, 1]} : vector<2x192xf32> to vector<2x12xf32>
    %c0_273 = arith.constant 0 : index
    %c2_274 = arith.constant 2 : index
    %c11_275 = arith.constant 11 : index
    %c0_276 = arith.constant 0 : index
    %505 = vector.load %arg4[%c0_273, %c2_274, %c11_275, %c0_276] : memref<2x3x12x12xf32, #tpu.memory_space<vmem>>, vector<2x1x1x12xf32>
    %506 = vector.shape_cast %505 : vector<2x1x1x12xf32> to vector<2x12xf32>
    %507 = vector.shape_cast %504 : vector<2x12xf32> to vector<2x1x1x12xf32>
    tpu.vector_store %arg4[%c0_273, %c2_274, %c11_275, %c0_276], %507 {strides = array<i32>} : memref<2x3x12x12xf32, #tpu.memory_space<vmem>>, vector<2x1x1x12xf32>,
    return
  }
  func.func @transform_0(%arg0: i32, %arg1: memref<3xf32, #tpu.memory_space<smem>>) -> (i32, i32) {
    %c0_i32 = arith.constant 0 : i32
    %c0_i32_0 = arith.constant 0 : i32
    %c0_i32_1 = arith.constant 0 : i32
    return %c0_i32, %c0_i32_0 : i32, i32
  }
  func.func @transform_1(%arg0: i32, %arg1: memref<3xf32, #tpu.memory_space<smem>>) -> (i32, i32) {
    %c0_i32 = arith.constant 0 : i32
    %c0_i32_0 = arith.constant 0 : i32
    %c0_i32_1 = arith.constant 0 : i32
    return %c0_i32, %c0_i32_0 : i32, i32
  }
  func.func @transform_2(%arg0: i32, %arg1: memref<3xf32, #tpu.memory_space<smem>>) -> (i32, i32, i32, i32) {
    %c0_i32 = arith.constant 0 : i32
    %c0_i32_0 = arith.constant 0 : i32
    %c0_i32_1 = arith.constant 0 : i32
    %c0_i32_2 = arith.constant 0 : i32
    %c0_i32_3 = arith.constant 0 : i32
    return %c0_i32, %c0_i32_0, %c0_i32_1, %c0_i32_2 : i32, i32, i32, i32
  }
}

</mosaic_0001>

<llo_original>
// kernel: tpu_custom_call.1
$region0: #{tpu_custom_call.1}
  #allocation0 [shape = 'u32[]', space=smem, size = 0x4, offset = 0x4, fixed_abs, tag = 'smem constant byte address 0x4 - core index']
  #allocation1 [shape = 'u32[144,128]{1,0:T(1,128)}', space=vmem, size = 0x12000, scoped, tag = 'internal scratch']
  #allocation2 [shape = 's32[1]{0}', space=sflag, size = 0x4, scoped, tag = 'scoped memory for tpu_custom_call.1']
  #allocation3 [shape = 'u8[512]{0}', space=smem, size = 0x200, scoped, tag = 'prefetched SMEM operand 0']
  %s0 = inlined_call_operand.hbm [shape: f32[3], index: 0, kind: input, shape index: {}]
  %s1 = inlined_call_operand.hbm [shape: f32[8,260], index: 1, kind: input, shape index: {}]
  %s2 = inlined_call_operand.hbm [shape: f32[8,75], index: 2, kind: input, shape index: {}]
  %s3 = inlined_call_operand.vmem [shape: f32[2,3,12,12], index: 3, kind: output, shape index: {}]
  %s4 = sld [smem:[#allocation0]]
  $region26: #{tpu_custom_call.1} parent=0
    _
  %s6 = ssub.s32 1, %s4
  %s7 = scalar_select 0, %s6, %s4
  %9 = dma.hbm_to_smem %s0, 16, [#allocation3], [#allocation2]
  %10 = dma.done [#allocation2], 16
  %11 = sfence
  $region1: #{tpu_custom_call.1} parent=0
    #allocation4 [shape = 'u8[12288]{0}', space=vmem, size = 0x3000, scoped, tag = 'input window, operand 1, single buffered']
    #allocation5 [shape = 's32[1]{0}', space=sflag, size = 0x4, scoped, tag = 'scoped memory for tpu_custom_call.1']
    #allocation6 [shape = 'u8[4096]{0}', space=vmem, size = 0x1000, scoped, tag = 'input window, operand 2, single buffered']
    #allocation7 [shape = 's32[1]{0}', space=sflag, size = 0x4, scoped, tag = 'scoped memory for tpu_custom_call.1']
    %12 = vsyncpa [#allocation5], 0
    %13 = vsyncpa [#allocation7], 0
    // Predicated region
    $region2: #{tpu_custom_call.1} parent=1 // pred_check
      _
    $region3: #{tpu_custom_call.1} parent=1 // pred_check_branch
      %15 = sbr.rel (0) target = $region5
    $region4: #{tpu_custom_call.1} parent=1 // pred_region
      %s17 = ssub.s32 384, 384
      %18 = vsyncadd [#allocation5], %s17
      %s20 = sshll.u32 [#allocation4], 4
      %s21 = int_to_ptr.vmem [resolvable:$true] %s20
      %23 = dma.hbm_to_vmem [thread:$0]  %s1, 384, %s21, [#allocation5]
    $region5: #{tpu_custom_call.1} parent=1 // pred_fallthru
      _
    // Predicated region
    $region6: #{tpu_custom_call.1} parent=1 // pred_check
      _
    $region7: #{tpu_custom_call.1} parent=1 // pred_check_branch
      %25 = sbr.rel (0) target = $region9
    $region8: #{tpu_custom_call.1} parent=1 // pred_region
      %s27 = ssub.s32 128, 128
      %28 = vsyncadd [#allocation7], %s27
      %s30 = sshll.u32 [#allocation6], 4
      %s31 = int_to_ptr.vmem [resolvable:$true] %s30
      %33 = dma.hbm_to_vmem [thread:$0]  %s2, 128, %s31, [#allocation7]
    $region9: #{tpu_custom_call.1} parent=1 // pred_fallthru
      _
    // Predicated region
    $region10: #{tpu_custom_call.1} parent=1 // pred_check
      _
    $region11: #{tpu_custom_call.1} parent=1 // pred_check_branch
      %35 = sbr.rel (0) target = $region13
    $region12: #{tpu_custom_call.1} parent=1 // pred_region
      %36 = dma.done [#allocation5], 384
    $region13: #{tpu_custom_call.1} parent=1 // pred_fallthru
      _
    // Predicated region
    $region14: #{tpu_custom_call.1} parent=1 // pred_check
      _
    $region15: #{tpu_custom_call.1} parent=1 // pred_check_branch
      %38 = sbr.rel (0) target = $region17
    $region16: #{tpu_custom_call.1} parent=1 // pred_region
      %39 = dma.done [#allocation7], 128
    $region17: #{tpu_custom_call.1} parent=1 // pred_fallthru
      _
    %v40 = vld [vmem:[#allocation4] sm:$0xff]
    %v41 = vld [vmem:[#allocation4 + $0x8] sm:$0xff]
    %v42 = vld [vmem:[#allocation6] sm:$0xff]
    %44 = vset.pattern.permute.xlu0 0
    %45 = vperm.xlu0 %44, %v42
    %v46 = vpop.permute.xlu0 %45
    %v48 = vmul.f32 %v46, %v40
    %v49 = vmul.f32 %v46, %v41
    %v50 = vadd.f32 %v48, 0.0
    %v51 = vadd.f32 %v49, 0.0
    %52 = vset.pattern.permute.xlu0 1
    %53 = vperm.xlu0 %52, %v42
    %v54 = vpop.permute.xlu0 %53
    %v56 = vmul.f32 %v54, %v40
    %v57 = vmul.f32 %v54, %v41
    %v58 = vadd.f32 %v56, 0.0
    %v59 = vadd.f32 %v57, 0.0
    %60 = vset.pattern.permute.xlu0 2
    %61 = vperm.xlu0 %60, %v42
    %v62 = vpop.permute.xlu0 %61
    %v64 = vmul.f32 %v62, %v40
    %v65 = vmul.f32 %v62, %v41
    %v66 = vadd.f32 %v64, 0.0
    %v67 = vadd.f32 %v65, 0.0
    %68 = vset.pattern.permute.xlu0 3
    %69 = vperm.xlu0 %68, %v42
    %v70 = vpop.permute.xlu0 %69
    %v72 = vmul.f32 %v70, %v40
    %v73 = vmul.f32 %v70, %v41
    %v74 = vadd.f32 %v72, 0.0
    %v75 = vadd.f32 %v73, 0.0
    %76 = vset.pattern.permute.xlu0 4
    %77 = vperm.xlu0 %76, %v42
    %v78 = vpop.permute.xlu0 %77
    %v80 = vmul.f32 %v78, %v40
    %v81 = vmul.f32 %v78, %v41
    %v82 = vadd.f32 %v80, 0.0
    %v83 = vadd.f32 %v81, 0.0
    %84 = vset.pattern.permute.xlu0 5
    %85 = vperm.xlu0 %84, %v42
    %v86 = vpop.permute.xlu0 %85
    %v88 = vmul.f32 %v86, %v40
    %v89 = vmul.f32 %v86, %v41
    %v90 = vadd.f32 %v88, 0.0
    %v91 = vadd.f32 %v89, 0.0
    %92 = vset.pattern.permute.xlu0 6
    %93 = vperm.xlu0 %92, %v42
    %v94 = vpop.permute.xlu0 %93
    %v96 = vmul.f32 %v94, %v40
    %v97 = vmul.f32 %v94, %v41
    %100 = vrot.lane.b32.xlu0 %v96, 126
    %v101 = vpop.permute.xlu0 %100
    %102 = vrot.lane.b32.xlu0 %v97, 126
    %v103 = vpop.permute.xlu0 %102
    %vm104 = vcmask 1031168
    %v105 = vsel %vm104, %v101, %v103
    %v108 = vadd.f32 %v50, %v105
    %v109 = vadd.f32 %v51, %v103
    %110 = vset.pattern.permute.xlu0 7
    %111 = vperm.xlu0 %110, %v42
    %v112 = vpop.permute.xlu0 %111
    %v114 = vmul.f32 %v112, %v40
    %v115 = vmul.f32 %v112, %v41
    %118 = vrot.lane.b32.xlu0 %v114, 126
    %v119 = vpop.permute.xlu0 %118
    %120 = vrot.lane.b32.xlu0 %v115, 126
    %v121 = vpop.permute.xlu0 %120
    %v122 = vsel %vm104, %v119, %v121
    %v125 = vadd.f32 %v58, %v122
    %v126 = vadd.f32 %v59, %v121
    %127 = vset.pattern.permute.xlu0 8
    %128 = vperm.xlu0 %127, %v42
    %v129 = vpop.permute.xlu0 %128
    %v131 = vmul.f32 %v129, %v40
    %v132 = vmul.f32 %v129, %v41
    %135 = vrot.lane.b32.xlu0 %v131, 126
    %v136 = vpop.permute.xlu0 %135
    %137 = vrot.lane.b32.xlu0 %v132, 126
    %v138 = vpop.permute.xlu0 %137
    %v139 = vsel %vm104, %v136, %v138
    %v142 = vadd.f32 %v66, %v139
    %v143 = vadd.f32 %v67, %v138
    %144 = vset.pattern.permute.xlu0 9
    %145 = vperm.xlu0 %144, %v42
    %v146 = vpop.permute.xlu0 %145
    %v148 = vmul.f32 %v146, %v40
    %v149 = vmul.f32 %v146, %v41
    %152 = vrot.lane.b32.xlu0 %v148, 126
    %v153 = vpop.permute.xlu0 %152
    %154 = vrot.lane.b32.xlu0 %v149, 126
    %v155 = vpop.permute.xlu0 %154
    %v156 = vsel %vm104, %v153, %v155
    %v159 = vadd.f32 %v74, %v156
    %v160 = vadd.f32 %v75, %v155
    %161 = vset.pattern.permute.xlu0 10
    %162 = vperm.xlu0 %161, %v42
    %v163 = vpop.permute.xlu0 %162
    %v165 = vmul.f32 %v163, %v40
    %v166 = vmul.f32 %v163, %v41
    %169 = vrot.lane.b32.xlu0 %v165, 126
    %v170 = vpop.permute.xlu0 %169
    %171 = vrot.lane.b32.xlu0 %v166, 126
    %v172 = vpop.permute.xlu0 %171
    %v173 = vsel %vm104, %v170, %v172
    %v176 = vadd.f32 %v82, %v173
    %v177 = vadd.f32 %v83, %v172
    %178 = vset.pattern.permute.xlu0 11
    %179 = vperm.xlu0 %178, %v42
    %v180 = vpop.permute.xlu0 %179
    %v182 = vmul.f32 %v180, %v40
    %v183 = vmul.f32 %v180, %v41
    %186 = vrot.lane.b32.xlu0 %v182, 126
    %v187 = vpop.permute.xlu0 %186
    %188 = vrot.lane.b32.xlu0 %v183, 126
    %v189 = vpop.permute.xlu0 %188
    %v190 = vsel %vm104, %v187, %v189
    %v193 = vadd.f32 %v90, %v190
    %v194 = vadd.f32 %v91, %v189
    %195 = vset.pattern.permute.xlu0 12
    %196 = vperm.xlu0 %195, %v42
    %v197 = vpop.permute.xlu0 %196
    %v199 = vmul.f32 %v197, %v40
    %v200 = vmul.f32 %v197, %v41
    %203 = vrot.lane.b32.xlu0 %v199, 124
    %v204 = vpop.permute.xlu0 %203
    %205 = vrot.lane.b32.xlu0 %v200, 124
    %v206 = vpop.permute.xlu0 %205
    %vm207 = vcmask 1014784
    %v208 = vsel %vm207, %v204, %v206
    %v211 = vadd.f32 %v108, %v208
    %v212 = vadd.f32 %v109, %v206
    %213 = vset.pattern.permute.xlu0 13
    %214 = vperm.xlu0 %213, %v42
    %v215 = vpop.permute.xlu0 %214
    %v217 = vmul.f32 %v215, %v40
    %v218 = vmul.f32 %v215, %v41
    %221 = vrot.lane.b32.xlu0 %v217, 124
    %v222 = vpop.permute.xlu0 %221
    %223 = vrot.lane.b32.xlu0 %v218, 124
    %v224 = vpop.permute.xlu0 %223
    %v225 = vsel %vm207, %v222, %v224
    %v228 = vadd.f32 %v125, %v225
    %v229 = vadd.f32 %v126, %v224
    %230 = vset.pattern.permute.xlu0 14
    %231 = vperm.xlu0 %230, %v42
    %v232 = vpop.permute.xlu0 %231
    %v234 = vmul.f32 %v232, %v40
    %v235 = vmul.f32 %v232, %v41
    %238 = vrot.lane.b32.xlu0 %v234, 124
    %v239 = vpop.permute.xlu0 %238
    %240 = vrot.lane.b32.xlu0 %v235, 124
    %v241 = vpop.permute.xlu0 %240
    %v242 = vsel %vm207, %v239, %v241
    %v245 = vadd.f32 %v142, %v242
    %v246 = vadd.f32 %v143, %v241
    %247 = vset.pattern.permute.xlu0 15
    %248 = vperm.xlu0 %247, %v42
    %v249 = vpop.permute.xlu0 %248
    %v251 = vmul.f32 %v249, %v40
    %v252 = vmul.f32 %v249, %v41
    %255 = vrot.lane.b32.xlu0 %v251, 113
    %v256 = vpop.permute.xlu0 %255
    %257 = vrot.lane.b32.xlu0 %v252, 113
    %v258 = vpop.permute.xlu0 %257
    %vm259 = vcmask 924672
    %v260 = vsel %vm259, %v256, %v258
    %v263 = vadd.f32 %v159, %v260
    %v264 = vadd.f32 %v160, %v258
    %265 = vset.pattern.permute.xlu0 16
    %266 = vperm.xlu0 %265, %v42
    %v267 = vpop.permute.xlu0 %266
    %v269 = vmul.f32 %v267, %v40
    %v270 = vmul.f32 %v267, %v41
    %273 = vrot.lane.b32.xlu0 %v269, 113
    %v274 = vpop.permute.xlu0 %273
    %275 = vrot.lane.b32.xlu0 %v270, 113
    %v276 = vpop.permute.xlu0 %275
    %v277 = vsel %vm259, %v274, %v276
    %v280 = vadd.f32 %v176, %v277
    %v281 = vadd.f32 %v177, %v276
    %282 = vset.pattern.permute.xlu0 17
    %283 = vperm.xlu0 %282, %v42
    %v284 = vpop.permute.xlu0 %283
    %v286 = vmul.f32 %v284, %v40
    %v287 = vmul.f32 %v284, %v41
    %290 = vrot.lane.b32.xlu0 %v286, 113
    %v291 = vpop.permute.xlu0 %290
    %292 = vrot.lane.b32.xlu0 %v287, 113
    %v293 = vpop.permute.xlu0 %292
    %v294 = vsel %vm259, %v291, %v293
    %v297 = vadd.f32 %v193, %v294
    %v298 = vadd.f32 %v194, %v293
    %299 = vset.pattern.permute.xlu0 18
    %300 = vperm.xlu0 %299, %v42
    %v301 = vpop.permute.xlu0 %300
    %v303 = vmul.f32 %v301, %v40
    %v304 = vmul.f32 %v301, %v41
    %307 = vrot.lane.b32.xlu0 %v303, 111
    %v308 = vpop.permute.xlu0 %307
    %309 = vrot.lane.b32.xlu0 %v304, 111
    %v310 = vpop.permute.xlu0 %309
    %vm311 = vcmask 908288
    %v312 = vsel %vm311, %v308, %v310
    %v315 = vadd.f32 %v211, %v312
    %v316 = vadd.f32 %v212, %v310
    %317 = vset.pattern.permute.xlu0 19
    %318 = vperm.xlu0 %317, %v42
    %v319 = vpop.permute.xlu0 %318
    %v321 = vmul.f32 %v319, %v40
    %v322 = vmul.f32 %v319, %v41
    %325 = vrot.lane.b32.xlu0 %v321, 111
    %v326 = vpop.permute.xlu0 %325
    %327 = vrot.lane.b32.xlu0 %v322, 111
    %v328 = vpop.permute.xlu0 %327
    %v329 = vsel %vm311, %v326, %v328
    %v332 = vadd.f32 %v228, %v329
    %v333 = vadd.f32 %v229, %v328
    %334 = vset.pattern.permute.xlu0 20
    %335 = vperm.xlu0 %334, %v42
    %v336 = vpop.permute.xlu0 %335
    %v338 = vmul.f32 %v336, %v40
    %v339 = vmul.f32 %v336, %v41
    %342 = vrot.lane.b32.xlu0 %v338, 111
    %v343 = vpop.permute.xlu0 %342
    %344 = vrot.lane.b32.xlu0 %v339, 111
    %v345 = vpop.permute.xlu0 %344
    %v346 = vsel %vm311, %v343, %v345
    %v349 = vadd.f32 %v245, %v346
    %v350 = vadd.f32 %v246, %v345
    %351 = vset.pattern.permute.xlu0 21
    %352 = vperm.xlu0 %351, %v42
    %v353 = vpop.permute.xlu0 %352
    %v355 = vmul.f32 %v353, %v40
    %v356 = vmul.f32 %v353, %v41
    %359 = vrot.lane.b32.xlu0 %v355, 111
    %v360 = vpop.permute.xlu0 %359
    %361 = vrot.lane.b32.xlu0 %v356, 111
    %v362 = vpop.permute.xlu0 %361
    %v363 = vsel %vm311, %v360, %v362
    %v366 = vadd.f32 %v263, %v363
    %v367 = vadd.f32 %v264, %v362
    %368 = vset.pattern.permute.xlu0 22
    %369 = vperm.xlu0 %368, %v42
    %v370 = vpop.permute.xlu0 %369
    %v372 = vmul.f32 %v370, %v40
    %v373 = vmul.f32 %v370, %v41
    %376 = vrot.lane.b32.xlu0 %v372, 111
    %v377 = vpop.permute.xlu0 %376
    %378 = vrot.lane.b32.xlu0 %v373, 111
    %v379 = vpop.permute.xlu0 %378
    %v380 = vsel %vm311, %v377, %v379
    %v383 = vadd.f32 %v280, %v380
    %v384 = vadd.f32 %v281, %v379
    %385 = vset.pattern.permute.xlu0 23
    %386 = vperm.xlu0 %385, %v42
    %v387 = vpop.permute.xlu0 %386
    %v389 = vmul.f32 %v387, %v40
    %v390 = vmul.f32 %v387, %v41
    %393 = vrot.lane.b32.xlu0 %v389, 111
    %v394 = vpop.permute.xlu0 %393
    %395 = vrot.lane.b32.xlu0 %v390, 111
    %v396 = vpop.permute.xlu0 %395
    %v397 = vsel %vm311, %v394, %v396
    %v400 = vadd.f32 %v297, %v397
    %v401 = vadd.f32 %v298, %v396
    %402 = vset.pattern.permute.xlu0 24
    %403 = vperm.xlu0 %402, %v42
    %v404 = vpop.permute.xlu0 %403
    %v406 = vmul.f32 %v404, %v40
    %v407 = vmul.f32 %v404, %v41
    %410 = vrot.lane.b32.xlu0 %v406, 109
    %v411 = vpop.permute.xlu0 %410
    %412 = vrot.lane.b32.xlu0 %v407, 109
    %v413 = vpop.permute.xlu0 %412
    %vm414 = vcmask 891904
    %v415 = vsel %vm414, %v411, %v413
    %v418 = vadd.f32 %v315, %v415
    %v419 = vadd.f32 %v316, %v413
    %420 = vset.pattern.permute.xlu0 25
    %421 = vperm.xlu0 %420, %v42
    %v422 = vpop.permute.xlu0 %421
    %v424 = vmul.f32 %v422, %v40
    %v425 = vmul.f32 %v422, %v41
    %428 = vrot.lane.b32.xlu0 %v424, 109
    %v429 = vpop.permute.xlu0 %428
    %430 = vrot.lane.b32.xlu0 %v425, 109
    %v431 = vpop.permute.xlu0 %430
    %v432 = vsel %vm414, %v429, %v431
    %v435 = vadd.f32 %v332, %v432
    %v436 = vadd.f32 %v333, %v431
    %437 = vset.pattern.permute.xlu0 26
    %438 = vperm.xlu0 %437, %v42
    %v439 = vpop.permute.xlu0 %438
    %v441 = vmul.f32 %v439, %v40
    %v442 = vmul.f32 %v439, %v41
    %445 = vrot.lane.b32.xlu0 %v441, 109
    %v446 = vpop.permute.xlu0 %445
    %447 = vrot.lane.b32.xlu0 %v442, 109
    %v448 = vpop.permute.xlu0 %447
    %v449 = vsel %vm414, %v446, %v448
    %v452 = vadd.f32 %v349, %v449
    %v453 = vadd.f32 %v350, %v448
    %454 = vset.pattern.permute.xlu0 27
    %455 = vperm.xlu0 %454, %v42
    %v456 = vpop.permute.xlu0 %455
    %v458 = vmul.f32 %v456, %v40
    %v459 = vmul.f32 %v456, %v41
    %462 = vrot.lane.b32.xlu0 %v458, 109
    %v463 = vpop.permute.xlu0 %462
    %464 = vrot.lane.b32.xlu0 %v459, 109
    %v465 = vpop.permute.xlu0 %464
    %v466 = vsel %vm414, %v463, %v465
    %v469 = vadd.f32 %v366, %v466
    %v470 = vadd.f32 %v367, %v465
    %471 = vset.pattern.permute.xlu0 28
    %472 = vperm.xlu0 %471, %v42
    %v473 = vpop.permute.xlu0 %472
    %v475 = vmul.f32 %v473, %v40
    %v476 = vmul.f32 %v473, %v41
    %479 = vrot.lane.b32.xlu0 %v475, 109
    %v480 = vpop.permute.xlu0 %479
    %481 = vrot.lane.b32.xlu0 %v476, 109
    %v482 = vpop.permute.xlu0 %481
    %v483 = vsel %vm414, %v480, %v482
    %v486 = vadd.f32 %v383, %v483
    %v487 = vadd.f32 %v384, %v482
    %488 = vset.pattern.permute.xlu0 29
    %489 = vperm.xlu0 %488, %v42
    %v490 = vpop.permute.xlu0 %489
    %v492 = vmul.f32 %v490, %v40
    %v493 = vmul.f32 %v490, %v41
    %496 = vrot.lane.b32.xlu0 %v492, 109
    %v497 = vpop.permute.xlu0 %496
    %498 = vrot.lane.b32.xlu0 %v493, 109
    %v499 = vpop.permute.xlu0 %498
    %v500 = vsel %vm414, %v497, %v499
    %v503 = vadd.f32 %v400, %v500
    %v504 = vadd.f32 %v401, %v499
    %505 = vset.pattern.permute.xlu0 30
    %506 = vperm.xlu0 %505, %v42
    %v507 = vpop.permute.xlu0 %506
    %v509 = vmul.f32 %v507, %v40
    %v510 = vmul.f32 %v507, %v41
    %513 = vrot.lane.b32.xlu0 %v509, 96
    %v514 = vpop.permute.xlu0 %513
    %515 = vrot.lane.b32.xlu0 %v510, 96
    %v516 = vpop.permute.xlu0 %515
    %vm517 = vcmask 785408
    %v518 = vsel %vm517, %v514, %v516
    %v521 = vadd.f32 %v418, %v518
    %v522 = vadd.f32 %v419, %v516
    %523 = vset.pattern.permute.xlu0 31
    %524 = vperm.xlu0 %523, %v42
    %v525 = vpop.permute.xlu0 %524
    %v527 = vmul.f32 %v525, %v40
    %v528 = vmul.f32 %v525, %v41
    %531 = vrot.lane.b32.xlu0 %v527, 96
    %v532 = vpop.permute.xlu0 %531
    %533 = vrot.lane.b32.xlu0 %v528, 96
    %v534 = vpop.permute.xlu0 %533
    %v535 = vsel %vm517, %v532, %v534
    %v538 = vadd.f32 %v435, %v535
    %v539 = vadd.f32 %v436, %v534
    %540 = vset.pattern.permute.xlu0 32
    %541 = vperm.xlu0 %540, %v42
    %v542 = vpop.permute.xlu0 %541
    %v544 = vmul.f32 %v542, %v40
    %v545 = vmul.f32 %v542, %v41
    %548 = vrot.lane.b32.xlu0 %v544, 96
    %v549 = vpop.permute.xlu0 %548
    %550 = vrot.lane.b32.xlu0 %v545, 96
    %v551 = vpop.permute.xlu0 %550
    %v552 = vsel %vm517, %v549, %v551
    %v555 = vadd.f32 %v452, %v552
    %v556 = vadd.f32 %v453, %v551
    %557 = vset.pattern.permute.xlu0 33
    %558 = vperm.xlu0 %557, %v42
    %v559 = vpop.permute.xlu0 %558
    %v561 = vmul.f32 %v559, %v40
    %v562 = vmul.f32 %v559, %v41
    %565 = vrot.lane.b32.xlu0 %v561, 96
    %v566 = vpop.permute.xlu0 %565
    %567 = vrot.lane.b32.xlu0 %v562, 96
    %v568 = vpop.permute.xlu0 %567
    %v569 = vsel %vm517, %v566, %v568
    %v572 = vadd.f32 %v469, %v569
    %v573 = vadd.f32 %v470, %v568
    %574 = vset.pattern.permute.xlu0 34
    %575 = vperm.xlu0 %574, %v42
    %v576 = vpop.permute.xlu0 %575
    %v578 = vmul.f32 %v576, %v40
    %v579 = vmul.f32 %v576, %v41
    %582 = vrot.lane.b32.xlu0 %v578, 96
    %v583 = vpop.permute.xlu0 %582
    %584 = vrot.lane.b32.xlu0 %v579, 96
    %v585 = vpop.permute.xlu0 %584
    %v586 = vsel %vm517, %v583, %v585
    %v589 = vadd.f32 %v486, %v586
    %v590 = vadd.f32 %v487, %v585
    %591 = vset.pattern.permute.xlu0 35
    %592 = vperm.xlu0 %591, %v42
    %v593 = vpop.permute.xlu0 %592
    %v595 = vmul.f32 %v593, %v40
    %v596 = vmul.f32 %v593, %v41
    %599 = vrot.lane.b32.xlu0 %v595, 96
    %v600 = vpop.permute.xlu0 %599
    %601 = vrot.lane.b32.xlu0 %v596, 96
    %v602 = vpop.permute.xlu0 %601
    %v603 = vsel %vm517, %v600, %v602
    %v606 = vadd.f32 %v503, %v603
    %v607 = vadd.f32 %v504, %v602
    %608 = vset.pattern.permute.xlu0 36
    %609 = vperm.xlu0 %608, %v42
    %v610 = vpop.permute.xlu0 %609
    %v612 = vmul.f32 %v610, %v40
    %v613 = vmul.f32 %v610, %v41
    %616 = vrot.lane.b32.xlu0 %v612, 94
    %v617 = vpop.permute.xlu0 %616
    %618 = vrot.lane.b32.xlu0 %v613, 94
    %v619 = vpop.permute.xlu0 %618
    %vm620 = vcmask 769024
    %v621 = vsel %vm620, %v617, %v619
    %v624 = vadd.f32 %v521, %v621
    %v625 = vadd.f32 %v522, %v619
    %626 = vset.pattern.permute.xlu0 37
    %627 = vperm.xlu0 %626, %v42
    %v628 = vpop.permute.xlu0 %627
    %v630 = vmul.f32 %v628, %v40
    %v631 = vmul.f32 %v628, %v41
    %634 = vrot.lane.b32.xlu0 %v630, 94
    %v635 = vpop.permute.xlu0 %634
    %636 = vrot.lane.b32.xlu0 %v631, 94
    %v637 = vpop.permute.xlu0 %636
    %v638 = vsel %vm620, %v635, %v637
    %v641 = vadd.f32 %v538, %v638
    %v642 = vadd.f32 %v539, %v637
    %643 = vset.pattern.permute.xlu0 38
    %644 = vperm.xlu0 %643, %v42
    %v645 = vpop.permute.xlu0 %644
    %v647 = vmul.f32 %v645, %v40
    %v648 = vmul.f32 %v645, %v41
    %651 = vrot.lane.b32.xlu0 %v647, 94
    %v652 = vpop.permute.xlu0 %651
    %653 = vrot.lane.b32.xlu0 %v648, 94
    %v654 = vpop.permute.xlu0 %653
    %v655 = vsel %vm620, %v652, %v654
    %v658 = vadd.f32 %v555, %v655
    %v659 = vadd.f32 %v556, %v654
    %660 = vset.pattern.permute.xlu0 39
    %661 = vperm.xlu0 %660, %v42
    %v662 = vpop.permute.xlu0 %661
    %v664 = vmul.f32 %v662, %v40
    %v665 = vmul.f32 %v662, %v41
    %668 = vrot.lane.b32.xlu0 %v664, 94
    %v669 = vpop.permute.xlu0 %668
    %670 = vrot.lane.b32.xlu0 %v665, 94
    %v671 = vpop.permute.xlu0 %670
    %v672 = vsel %vm620, %v669, %v671
    %v675 = vadd.f32 %v572, %v672
    %v676 = vadd.f32 %v573, %v671
    %677 = vset.pattern.permute.xlu0 40
    %678 = vperm.xlu0 %677, %v42
    %v679 = vpop.permute.xlu0 %678
    %v681 = vmul.f32 %v679, %v40
    %v682 = vmul.f32 %v679, %v41
    %685 = vrot.lane.b32.xlu0 %v681, 94
    %v686 = vpop.permute.xlu0 %685
    %687 = vrot.lane.b32.xlu0 %v682, 94
    %v688 = vpop.permute.xlu0 %687
    %v689 = vsel %vm620, %v686, %v688
    %v692 = vadd.f32 %v589, %v689
    %v693 = vadd.f32 %v590, %v688
    %694 = vset.pattern.permute.xlu0 41
    %695 = vperm.xlu0 %694, %v42
    %v696 = vpop.permute.xlu0 %695
    %v698 = vmul.f32 %v696, %v40
    %v699 = vmul.f32 %v696, %v41
    %702 = vrot.lane.b32.xlu0 %v698, 94
    %v703 = vpop.permute.xlu0 %702
    %704 = vrot.lane.b32.xlu0 %v699, 94
    %v705 = vpop.permute.xlu0 %704
    %v706 = vsel %vm620, %v703, %v705
    %v709 = vadd.f32 %v606, %v706
    %v710 = vadd.f32 %v607, %v705
    %711 = vset.pattern.permute.xlu0 42
    %712 = vperm.xlu0 %711, %v42
    %v713 = vpop.permute.xlu0 %712
    %v715 = vmul.f32 %v713, %v40
    %v716 = vmul.f32 %v713, %v41
    %719 = vrot.lane.b32.xlu0 %v715, 92
    %v720 = vpop.permute.xlu0 %719
    %721 = vrot.lane.b32.xlu0 %v716, 92
    %v722 = vpop.permute.xlu0 %721
    %vm723 = vcmask 752640
    %v724 = vsel %vm723, %v720, %v722
    %v727 = vadd.f32 %v624, %v724
    %v728 = vadd.f32 %v625, %v722
    %729 = vset.pattern.permute.xlu0 43
    %730 = vperm.xlu0 %729, %v42
    %v731 = vpop.permute.xlu0 %730
    %v733 = vmul.f32 %v731, %v40
    %v734 = vmul.f32 %v731, %v41
    %737 = vrot.lane.b32.xlu0 %v733, 92
    %v738 = vpop.permute.xlu0 %737
    %739 = vrot.lane.b32.xlu0 %v734, 92
    %v740 = vpop.permute.xlu0 %739
    %v741 = vsel %vm723, %v738, %v740
    %v744 = vadd.f32 %v641, %v741
    %v745 = vadd.f32 %v642, %v740
    %746 = vset.pattern.permute.xlu0 44
    %747 = vperm.xlu0 %746, %v42
    %v748 = vpop.permute.xlu0 %747
    %v750 = vmul.f32 %v748, %v40
    %v751 = vmul.f32 %v748, %v41
    %754 = vrot.lane.b32.xlu0 %v750, 92
    %v755 = vpop.permute.xlu0 %754
    %756 = vrot.lane.b32.xlu0 %v751, 92
    %v757 = vpop.permute.xlu0 %756
    %v758 = vsel %vm723, %v755, %v757
    %v761 = vadd.f32 %v658, %v758
    %v762 = vadd.f32 %v659, %v757
    %763 = vset.pattern.permute.xlu0 45
    %764 = vperm.xlu0 %763, %v42
    %v765 = vpop.permute.xlu0 %764
    %v767 = vmul.f32 %v765, %v40
    %v768 = vmul.f32 %v765, %v41
    %771 = vrot.lane.b32.xlu0 %v767, 81
    %v772 = vpop.permute.xlu0 %771
    %773 = vrot.lane.b32.xlu0 %v768, 81
    %v774 = vpop.permute.xlu0 %773
    %vm775 = vcmask 662528
    %v776 = vsel %vm775, %v772, %v774
    %v779 = vadd.f32 %v675, %v776
    %v780 = vadd.f32 %v676, %v774
    %781 = vset.pattern.permute.xlu0 46
    %782 = vperm.xlu0 %781, %v42
    %v783 = vpop.permute.xlu0 %782
    %v785 = vmul.f32 %v783, %v40
    %v786 = vmul.f32 %v783, %v41
    %789 = vrot.lane.b32.xlu0 %v785, 81
    %v790 = vpop.permute.xlu0 %789
    %791 = vrot.lane.b32.xlu0 %v786, 81
    %v792 = vpop.permute.xlu0 %791
    %v793 = vsel %vm775, %v790, %v792
    %v796 = vadd.f32 %v692, %v793
    %v797 = vadd.f32 %v693, %v792
    %798 = vset.pattern.permute.xlu0 47
    %799 = vperm.xlu0 %798, %v42
    %v800 = vpop.permute.xlu0 %799
    %v802 = vmul.f32 %v800, %v40
    %v803 = vmul.f32 %v800, %v41
    %806 = vrot.lane.b32.xlu0 %v802, 81
    %v807 = vpop.permute.xlu0 %806
    %808 = vrot.lane.b32.xlu0 %v803, 81
    %v809 = vpop.permute.xlu0 %808
    %v810 = vsel %vm775, %v807, %v809
    %v813 = vadd.f32 %v709, %v810
    %v814 = vadd.f32 %v710, %v809
    %815 = vset.pattern.permute.xlu0 48
    %816 = vperm.xlu0 %815, %v42
    %v817 = vpop.permute.xlu0 %816
    %v819 = vmul.f32 %v817, %v40
    %v820 = vmul.f32 %v817, %v41
    %823 = vrot.lane.b32.xlu0 %v819, 79
    %v824 = vpop.permute.xlu0 %823
    %825 = vrot.lane.b32.xlu0 %v820, 79
    %v826 = vpop.permute.xlu0 %825
    %vm827 = vcmask 646144
    %v828 = vsel %vm827, %v824, %v826
    %v831 = vadd.f32 %v727, %v828
    %v832 = vadd.f32 %v728, %v826
    %833 = vset.pattern.permute.xlu0 49
    %834 = vperm.xlu0 %833, %v42
    %v835 = vpop.permute.xlu0 %834
    %v837 = vmul.f32 %v835, %v40
    %v838 = vmul.f32 %v835, %v41
    %841 = vrot.lane.b32.xlu0 %v837, 79
    %v842 = vpop.permute.xlu0 %841
    %843 = vrot.lane.b32.xlu0 %v838, 79
    %v844 = vpop.permute.xlu0 %843
    %v845 = vsel %vm827, %v842, %v844
    %v848 = vadd.f32 %v744, %v845
    %v849 = vadd.f32 %v745, %v844
    %850 = vset.pattern.permute.xlu0 50
    %851 = vperm.xlu0 %850, %v42
    %v852 = vpop.permute.xlu0 %851
    %v854 = vmul.f32 %v852, %v40
    %v855 = vmul.f32 %v852, %v41
    %858 = vrot.lane.b32.xlu0 %v854, 79
    %v859 = vpop.permute.xlu0 %858
    %860 = vrot.lane.b32.xlu0 %v855, 79
    %v861 = vpop.permute.xlu0 %860
    %v862 = vsel %vm827, %v859, %v861
    %v865 = vadd.f32 %v761, %v862
    %v866 = vadd.f32 %v762, %v861
    %867 = vset.pattern.permute.xlu0 51
    %868 = vperm.xlu0 %867, %v42
    %v869 = vpop.permute.xlu0 %868
    %v871 = vmul.f32 %v869, %v40
    %v872 = vmul.f32 %v869, %v41
    %875 = vrot.lane.b32.xlu0 %v871, 79
    %v876 = vpop.permute.xlu0 %875
    %877 = vrot.lane.b32.xlu0 %v872, 79
    %v878 = vpop.permute.xlu0 %877
    %v879 = vsel %vm827, %v876, %v878
    %v882 = vadd.f32 %v779, %v879
    %v883 = vadd.f32 %v780, %v878
    %884 = vset.pattern.permute.xlu0 52
    %885 = vperm.xlu0 %884, %v42
    %v886 = vpop.permute.xlu0 %885
    %v888 = vmul.f32 %v886, %v40
    %v889 = vmul.f32 %v886, %v41
    %892 = vrot.lane.b32.xlu0 %v888, 79
    %v893 = vpop.permute.xlu0 %892
    %894 = vrot.lane.b32.xlu0 %v889, 79
    %v895 = vpop.permute.xlu0 %894
    %v896 = vsel %vm827, %v893, %v895
    %v899 = vadd.f32 %v796, %v896
    %v900 = vadd.f32 %v797, %v895
    %901 = vset.pattern.permute.xlu0 53
    %902 = vperm.xlu0 %901, %v42
    %v903 = vpop.permute.xlu0 %902
    %v905 = vmul.f32 %v903, %v40
    %v906 = vmul.f32 %v903, %v41
    %909 = vrot.lane.b32.xlu0 %v905, 79
    %v910 = vpop.permute.xlu0 %909
    %911 = vrot.lane.b32.xlu0 %v906, 79
    %v912 = vpop.permute.xlu0 %911
    %v913 = vsel %vm827, %v910, %v912
    %v916 = vadd.f32 %v813, %v913
    %v917 = vadd.f32 %v814, %v912
    %918 = vset.pattern.permute.xlu0 54
    %919 = vperm.xlu0 %918, %v42
    %v920 = vpop.permute.xlu0 %919
    %v922 = vmul.f32 %v920, %v40
    %v923 = vmul.f32 %v920, %v41
    %926 = vrot.lane.b32.xlu0 %v922, 77
    %v927 = vpop.permute.xlu0 %926
    %928 = vrot.lane.b32.xlu0 %v923, 77
    %v929 = vpop.permute.xlu0 %928
    %vm930 = vcmask 629760
    %v931 = vsel %vm930, %v927, %v929
    %v934 = vadd.f32 %v831, %v931
    %v935 = vadd.f32 %v832, %v929
    %936 = vset.pattern.permute.xlu0 55
    %937 = vperm.xlu0 %936, %v42
    %v938 = vpop.permute.xlu0 %937
    %v940 = vmul.f32 %v938, %v40
    %v941 = vmul.f32 %v938, %v41
    %944 = vrot.lane.b32.xlu0 %v940, 77
    %v945 = vpop.permute.xlu0 %944
    %946 = vrot.lane.b32.xlu0 %v941, 77
    %v947 = vpop.permute.xlu0 %946
    %v948 = vsel %vm930, %v945, %v947
    %v951 = vadd.f32 %v848, %v948
    %v952 = vadd.f32 %v849, %v947
    %953 = vset.pattern.permute.xlu0 56
    %954 = vperm.xlu0 %953, %v42
    %v955 = vpop.permute.xlu0 %954
    %v957 = vmul.f32 %v955, %v40
    %v958 = vmul.f32 %v955, %v41
    %961 = vrot.lane.b32.xlu0 %v957, 77
    %v962 = vpop.permute.xlu0 %961
    %963 = vrot.lane.b32.xlu0 %v958, 77
    %v964 = vpop.permute.xlu0 %963
    %v965 = vsel %vm930, %v962, %v964
    %v968 = vadd.f32 %v865, %v965
    %v969 = vadd.f32 %v866, %v964
    %970 = vset.pattern.permute.xlu0 57
    %971 = vperm.xlu0 %970, %v42
    %v972 = vpop.permute.xlu0 %971
    %v974 = vmul.f32 %v972, %v40
    %v975 = vmul.f32 %v972, %v41
    %978 = vrot.lane.b32.xlu0 %v974, 77
    %v979 = vpop.permute.xlu0 %978
    %980 = vrot.lane.b32.xlu0 %v975, 77
    %v981 = vpop.permute.xlu0 %980
    %v982 = vsel %vm930, %v979, %v981
    %v985 = vadd.f32 %v882, %v982
    %v986 = vadd.f32 %v883, %v981
    %987 = vset.pattern.permute.xlu0 58
    %988 = vperm.xlu0 %987, %v42
    %v989 = vpop.permute.xlu0 %988
    %v991 = vmul.f32 %v989, %v40
    %v992 = vmul.f32 %v989, %v41
    %995 = vrot.lane.b32.xlu0 %v991, 77
    %v996 = vpop.permute.xlu0 %995
    %997 = vrot.lane.b32.xlu0 %v992, 77
    %v998 = vpop.permute.xlu0 %997
    %v999 = vsel %vm930, %v996, %v998
    %v1002 = vadd.f32 %v899, %v999
    %v1003 = vadd.f32 %v900, %v998
    %1004 = vset.pattern.permute.xlu0 59
    %1005 = vperm.xlu0 %1004, %v42
    %v1006 = vpop.permute.xlu0 %1005
    %v1008 = vmul.f32 %v1006, %v40
    %v1009 = vmul.f32 %v1006, %v41
    %1012 = vrot.lane.b32.xlu0 %v1008, 77
    %v1013 = vpop.permute.xlu0 %1012
    %1014 = vrot.lane.b32.xlu0 %v1009, 77
    %v1015 = vpop.permute.xlu0 %1014
    %v1016 = vsel %vm930, %v1013, %v1015
    %v1019 = vadd.f32 %v916, %v1016
    %v1020 = vadd.f32 %v917, %v1015
    %1021 = vset.pattern.permute.xlu0 60
    %1022 = vperm.xlu0 %1021, %v42
    %v1023 = vpop.permute.xlu0 %1022
    %v1025 = vmul.f32 %v1023, %v40
    %v1026 = vmul.f32 %v1023, %v41
    %1029 = vrot.lane.b32.xlu0 %v1025, 64
    %v1030 = vpop.permute.xlu0 %1029
    %1031 = vrot.lane.b32.xlu0 %v1026, 64
    %v1032 = vpop.permute.xlu0 %1031
    %vm1033 = vcmask 523264
    %v1034 = vsel %vm1033, %v1030, %v1032
    %v1037 = vadd.f32 %v934, %v1034
    %v1038 = vadd.f32 %v935, %v1032
    %1039 = vset.pattern.permute.xlu0 61
    %1040 = vperm.xlu0 %1039, %v42
    %v1041 = vpop.permute.xlu0 %1040
    %v1043 = vmul.f32 %v1041, %v40
    %v1044 = vmul.f32 %v1041, %v41
    %1047 = vrot.lane.b32.xlu0 %v1043, 64
    %v1048 = vpop.permute.xlu0 %1047
    %1049 = vrot.lane.b32.xlu0 %v1044, 64
    %v1050 = vpop.permute.xlu0 %1049
    %v1051 = vsel %vm1033, %v1048, %v1050
    %v1054 = vadd.f32 %v951, %v1051
    %v1055 = vadd.f32 %v952, %v1050
    %1056 = vset.pattern.permute.xlu0 62
    %1057 = vperm.xlu0 %1056, %v42
    %v1058 = vpop.permute.xlu0 %1057
    %v1060 = vmul.f32 %v1058, %v40
    %v1061 = vmul.f32 %v1058, %v41
    %1064 = vrot.lane.b32.xlu0 %v1060, 64
    %v1065 = vpop.permute.xlu0 %1064
    %1066 = vrot.lane.b32.xlu0 %v1061, 64
    %v1067 = vpop.permute.xlu0 %1066
    %v1068 = vsel %vm1033, %v1065, %v1067
    %v1071 = vadd.f32 %v968, %v1068
    %v1072 = vadd.f32 %v969, %v1067
    %v1073 = vld [vmem:[#allocation4] sm:$0xff]
    %v1074 = vld [vmem:[#allocation4 + $0x8] sm:$0xff]
    %v1075 = vld [vmem:[#allocation4 + $0x10] sm:$0xff]
    %1076 = vset.pattern.permute.xlu0 63
    %1077 = vperm.xlu0 %1076, %v42
    %v1078 = vpop.permute.xlu0 %1077
    %v1080 = vmul.f32 %v1078, %v1073
    %v1081 = vmul.f32 %v1078, %v1074
    %v1082 = vmul.f32 %v1078, %v1075
    %1086 = vrot.lane.b32.xlu0 %v1080, 64
    %v1087 = vpop.permute.xlu0 %1086
    %1088 = vrot.lane.b32.xlu0 %v1081, 64
    %v1089 = vpop.permute.xlu0 %1088
    %1090 = vrot.lane.b32.xlu0 %v1082, 64
    %v1091 = vpop.permute.xlu0 %1090
    %v1092 = vsel %vm1033, %v1087, %v1089
    %v1093 = vsel %vm1033, %v1089, %v1091
    %v1096 = vadd.f32 %v985, %v1092
    %v1097 = vadd.f32 %v986, %v1093
    %1098 = vset.pattern.permute.xlu0 64
    %1099 = vperm.xlu0 %1098, %v42
    %v1100 = vpop.permute.xlu0 %1099
    %v1102 = vmul.f32 %v1100, %v1073
    %v1103 = vmul.f32 %v1100, %v1074
    %v1104 = vmul.f32 %v1100, %v1075
    %1108 = vrot.lane.b32.xlu0 %v1102, 64
    %v1109 = vpop.permute.xlu0 %1108
    %1110 = vrot.lane.b32.xlu0 %v1103, 64
    %v1111 = vpop.permute.xlu0 %1110
    %1112 = vrot.lane.b32.xlu0 %v1104, 64
    %v1113 = vpop.permute.xlu0 %1112
    %v1114 = vsel %vm1033, %v1109, %v1111
    %v1115 = vsel %vm1033, %v1111, %v1113
    %v1118 = vadd.f32 %v1002, %v1114
    %v1119 = vadd.f32 %v1003, %v1115
    %1120 = vset.pattern.permute.xlu0 65
    %1121 = vperm.xlu0 %1120, %v42
    %v1122 = vpop.permute.xlu0 %1121
    %v1124 = vmul.f32 %v1122, %v1073
    %v1125 = vmul.f32 %v1122, %v1074
    %v1126 = vmul.f32 %v1122, %v1075
    %1130 = vrot.lane.b32.xlu0 %v1124, 64
    %v1131 = vpop.permute.xlu0 %1130
    %1132 = vrot.lane.b32.xlu0 %v1125, 64
    %v1133 = vpop.permute.xlu0 %1132
    %1134 = vrot.lane.b32.xlu0 %v1126, 64
    %v1135 = vpop.permute.xlu0 %1134
    %v1136 = vsel %vm1033, %v1131, %v1133
    %v1137 = vsel %vm1033, %v1133, %v1135
    %v1140 = vadd.f32 %v1019, %v1136
    %v1141 = vadd.f32 %v1020, %v1137
    %1142 = vset.pattern.permute.xlu0 66
    %1143 = vperm.xlu0 %1142, %v42
    %v1144 = vpop.permute.xlu0 %1143
    %v1146 = vmul.f32 %v1144, %v1073
    %v1147 = vmul.f32 %v1144, %v1074
    %v1148 = vmul.f32 %v1144, %v1075
    %1152 = vrot.lane.b32.xlu0 %v1146, 62
    %v1153 = vpop.permute.xlu0 %1152
    %1154 = vrot.lane.b32.xlu0 %v1147, 62
    %v1155 = vpop.permute.xlu0 %1154
    %1156 = vrot.lane.b32.xlu0 %v1148, 62
    %v1157 = vpop.permute.xlu0 %1156
    %vm1158 = vcmask 506880
    %v1159 = vsel %vm1158, %v1153, %v1155
    %v1160 = vsel %vm1158, %v1155, %v1157
    %v1163 = vadd.f32 %v1037, %v1159
    %v1164 = vadd.f32 %v1038, %v1160
    %1165 = vset.pattern.permute.xlu0 67
    %1166 = vperm.xlu0 %1165, %v42
    %v1167 = vpop.permute.xlu0 %1166
    %v1169 = vmul.f32 %v1167, %v1073
    %v1170 = vmul.f32 %v1167, %v1074
    %v1171 = vmul.f32 %v1167, %v1075
    %1175 = vrot.lane.b32.xlu0 %v1169, 62
    %v1176 = vpop.permute.xlu0 %1175
    %1177 = vrot.lane.b32.xlu0 %v1170, 62
    %v1178 = vpop.permute.xlu0 %1177
    %1179 = vrot.lane.b32.xlu0 %v1171, 62
    %v1180 = vpop.permute.xlu0 %1179
    %v1181 = vsel %vm1158, %v1176, %v1178
    %v1182 = vsel %vm1158, %v1178, %v1180
    %v1185 = vadd.f32 %v1054, %v1181
    %v1186 = vadd.f32 %v1055, %v1182
    %1187 = vset.pattern.permute.xlu0 68
    %1188 = vperm.xlu0 %1187, %v42
    %v1189 = vpop.permute.xlu0 %1188
    %v1191 = vmul.f32 %v1189, %v1073
    %v1192 = vmul.f32 %v1189, %v1074
    %v1193 = vmul.f32 %v1189, %v1075
    %1197 = vrot.lane.b32.xlu0 %v1191, 62
    %v1198 = vpop.permute.xlu0 %1197
    %1199 = vrot.lane.b32.xlu0 %v1192, 62
    %v1200 = vpop.permute.xlu0 %1199
    %1201 = vrot.lane.b32.xlu0 %v1193, 62
    %v1202 = vpop.permute.xlu0 %1201
    %v1203 = vsel %vm1158, %v1198, %v1200
    %v1204 = vsel %vm1158, %v1200, %v1202
    %v1207 = vadd.f32 %v1071, %v1203
    %v1208 = vadd.f32 %v1072, %v1204
    %1209 = vset.pattern.permute.xlu0 69
    %1210 = vperm.xlu0 %1209, %v42
    %v1211 = vpop.permute.xlu0 %1210
    %v1213 = vmul.f32 %v1211, %v1073
    %v1214 = vmul.f32 %v1211, %v1074
    %v1215 = vmul.f32 %v1211, %v1075
    %1219 = vrot.lane.b32.xlu0 %v1213, 62
    %v1220 = vpop.permute.xlu0 %1219
    %1221 = vrot.lane.b32.xlu0 %v1214, 62
    %v1222 = vpop.permute.xlu0 %1221
    %1223 = vrot.lane.b32.xlu0 %v1215, 62
    %v1224 = vpop.permute.xlu0 %1223
    %v1225 = vsel %vm1158, %v1220, %v1222
    %v1226 = vsel %vm1158, %v1222, %v1224
    %v1229 = vadd.f32 %v1096, %v1225
    %v1230 = vadd.f32 %v1097, %v1226
    %1231 = vset.pattern.permute.xlu0 70
    %1232 = vperm.xlu0 %1231, %v42
    %v1233 = vpop.permute.xlu0 %1232
    %v1235 = vmul.f32 %v1233, %v1073
    %v1236 = vmul.f32 %v1233, %v1074
    %v1237 = vmul.f32 %v1233, %v1075
    %1241 = vrot.lane.b32.xlu0 %v1235, 62
    %v1242 = vpop.permute.xlu0 %1241
    %1243 = vrot.lane.b32.xlu0 %v1236, 62
    %v1244 = vpop.permute.xlu0 %1243
    %1245 = vrot.lane.b32.xlu0 %v1237, 62
    %v1246 = vpop.permute.xlu0 %1245
    %v1247 = vsel %vm1158, %v1242, %v1244
    %v1248 = vsel %vm1158, %v1244, %v1246
    %v1251 = vadd.f32 %v1118, %v1247
    %v1252 = vadd.f32 %v1119, %v1248
    %1253 = vset.pattern.permute.xlu0 71
    %1254 = vperm.xlu0 %1253, %v42
    %v1255 = vpop.permute.xlu0 %1254
    %v1257 = vmul.f32 %v1255, %v1073
    %v1258 = vmul.f32 %v1255, %v1074
    %v1259 = vmul.f32 %v1255, %v1075
    %1263 = vrot.lane.b32.xlu0 %v1257, 62
    %v1264 = vpop.permute.xlu0 %1263
    %1265 = vrot.lane.b32.xlu0 %v1258, 62
    %v1266 = vpop.permute.xlu0 %1265
    %1267 = vrot.lane.b32.xlu0 %v1259, 62
    %v1268 = vpop.permute.xlu0 %1267
    %v1269 = vsel %vm1158, %v1264, %v1266
    %v1270 = vsel %vm1158, %v1266, %v1268
    %v1273 = vadd.f32 %v1140, %v1269
    %v1274 = vadd.f32 %v1141, %v1270
    %1275 = vset.pattern.permute.xlu0 72
    %1276 = vperm.xlu0 %1275, %v42
    %v1277 = vpop.permute.xlu0 %1276
    %v1279 = vmul.f32 %v1277, %v1073
    %v1280 = vmul.f32 %v1277, %v1074
    %v1281 = vmul.f32 %v1277, %v1075
    %1285 = vrot.lane.b32.xlu0 %v1279, 60
    %v1286 = vpop.permute.xlu0 %1285
    %1287 = vrot.lane.b32.xlu0 %v1280, 60
    %v1288 = vpop.permute.xlu0 %1287
    %1289 = vrot.lane.b32.xlu0 %v1281, 60
    %v1290 = vpop.permute.xlu0 %1289
    %vm1291 = vcmask 490496
    %v1292 = vsel %vm1291, %v1286, %v1288
    %v1293 = vsel %vm1291, %v1288, %v1290
    %v1296 = vadd.f32 %v1163, %v1292
    %v1297 = vadd.f32 %v1164, %v1293
    %1298 = vset.pattern.permute.xlu0 73
    %1299 = vperm.xlu0 %1298, %v42
    %v1300 = vpop.permute.xlu0 %1299
    %v1302 = vmul.f32 %v1300, %v1073
    %v1303 = vmul.f32 %v1300, %v1074
    %v1304 = vmul.f32 %v1300, %v1075
    %1308 = vrot.lane.b32.xlu0 %v1302, 60
    %v1309 = vpop.permute.xlu0 %1308
    %1310 = vrot.lane.b32.xlu0 %v1303, 60
    %v1311 = vpop.permute.xlu0 %1310
    %1312 = vrot.lane.b32.xlu0 %v1304, 60
    %v1313 = vpop.permute.xlu0 %1312
    %v1314 = vsel %vm1291, %v1309, %v1311
    %v1315 = vsel %vm1291, %v1311, %v1313
    %v1318 = vadd.f32 %v1185, %v1314
    %v1319 = vadd.f32 %v1186, %v1315
    %1320 = vset.pattern.permute.xlu0 74
    %1321 = vperm.xlu0 %1320, %v42
    %v1322 = vpop.permute.xlu0 %1321
    %v1324 = vmul.f32 %v1322, %v1073
    %v1325 = vmul.f32 %v1322, %v1074
    %v1326 = vmul.f32 %v1322, %v1075
    %1330 = vrot.lane.b32.xlu0 %v1324, 60
    %v1331 = vpop.permute.xlu0 %1330
    %1332 = vrot.lane.b32.xlu0 %v1325, 60
    %v1333 = vpop.permute.xlu0 %1332
    %1334 = vrot.lane.b32.xlu0 %v1326, 60
    %v1335 = vpop.permute.xlu0 %1334
    %v1336 = vsel %vm1291, %v1331, %v1333
    %v1337 = vsel %vm1291, %v1333, %v1335
    %v1340 = vadd.f32 %v1207, %v1336
    %v1341 = vadd.f32 %v1208, %v1337
    %1344 = vrot.lane.b32.xlu0 %v1229, 127
    %v1345 = vpop.permute.xlu0 %1344
    %1346 = vrot.lane.b32.xlu0 %v1230, 127
    %v1347 = vpop.permute.xlu0 %1346
    %vm1348 = vcmask 1039360
    %v1349 = vsel %vm1348, %v1345, %v1347
    %v1352 = vadd.f32 %v1296, %v1349
    %v1353 = vadd.f32 %v1297, %v1347
    %v1356 = vrot.slane %v1352, 2
    %v1357 = vrot.slane %v1353, 2
    %v1360 = vadd.f32 %v1352, %v1356
    %v1361 = vadd.f32 %v1353, %v1357
    %v1362 = vrot.slane %v1352, 4
    %v1363 = vrot.slane %v1353, 4
    %v1366 = vadd.f32 %v1360, %v1362
    %v1367 = vadd.f32 %v1361, %v1363
    %v1368 = vrot.slane %v1352, 6
    %v1369 = vrot.slane %v1353, 6
    %v1372 = vadd.f32 %v1366, %v1368
    %v1373 = vadd.f32 %v1367, %v1369
    %s1374 = sld [smem:[#allocation3]]
    %v1375 = vstv %s1374
    %v1376 = vadd.f32 %v1372, %v1375
    %v1377 = vadd.f32 %v1373, %v1375
    %v1380 = vunpack.c.l.s4 1966171168
    %v1381 = vunpack.c.0.s8 %v1380
    %v1382 = vlaneseq
    %v1383 = vshrl.u32 %v1382, 7
    %v1384 = vsub.s32 %v1381, %v1383
    %v1385 = vrot.slane %v1376, %v1384
    %v1386 = vcombine.high %v1385, %v1385
    %v1388 = vunpack.c.l.s4 1966171168
    %v1389 = vunpack.c.0.s8 %v1388
    %v1390 = vlaneseq
    %v1391 = vshrl.u32 %v1390, 7
    %v1392 = vsub.s32 %v1389, %v1391
    %v1393 = vrot.slane %v1385, %v1392
    %v1395 = vunpack.c.l.s4 1966171168
    %v1396 = vunpack.c.0.s8 %v1395
    %v1397 = vlaneseq
    %v1398 = vshrl.u32 %v1397, 7
    %v1399 = vsub.s32 %v1396, %v1398
    %v1400 = vrot.slane %v1386, %v1399
    %vm1403 = vcmask 90112
    %1404 = vst.msk [vmem:[%s3] sm:$0x1] %vm1403, %v1393
    %1405 = vst.msk [vmem:[%s3 + $0x30] sm:$0x1] %vm1403, %v1400
    %v1406 = vlaneseq
    %v1407 = vshrl.u32 %v1406, 7
    %v1408 = vsub.s32 0, %v1407
    %v1409 = vrot.slane %v1393, %v1408
    %v1410 = vlaneseq
    %v1411 = vshrl.u32 %v1410, 7
    %v1412 = vsub.s32 0, %v1411
    %v1413 = vrot.slane %v1400, %v1412
    %1414 = vrot.lane.b32.xlu0 %v1409, 112
    %v1415 = vpop.permute.xlu0 %1414
    %1416 = vrot.lane.b32.xlu0 %v1413, 112
    %v1417 = vpop.permute.xlu0 %1416
    %1420 = vst.msk [vmem:[%s3 + $0x1] sm:$0x1] %vm1403, %v1415
    %1421 = vst.msk [vmem:[%s3 + $0x31] sm:$0x1] %vm1403, %v1417
    %1422 = vrot.lane.b32.xlu0 %v1409, 96
    %v1423 = vpop.permute.xlu0 %1422
    %1424 = vrot.lane.b32.xlu0 %v1413, 96
    %v1425 = vpop.permute.xlu0 %1424
    %1428 = vst.msk [vmem:[%s3 + $0x2] sm:$0x1] %vm1403, %v1423
    %1429 = vst.msk [vmem:[%s3 + $0x32] sm:$0x1] %vm1403, %v1425
    %1430 = vrot.lane.b32.xlu0 %v1409, 80
    %v1431 = vpop.permute.xlu0 %1430
    %1432 = vrot.lane.b32.xlu0 %v1413, 80
    %v1433 = vpop.permute.xlu0 %1432
    %1436 = vst.msk [vmem:[%s3 + $0x3] sm:$0x1] %vm1403, %v1431
    %1437 = vst.msk [vmem:[%s3 + $0x33] sm:$0x1] %vm1403, %v1433
    %1438 = vrot.lane.b32.xlu0 %v1409, 64
    %v1439 = vpop.permute.xlu0 %1438
    %1440 = vrot.lane.b32.xlu0 %v1413, 64
    %v1441 = vpop.permute.xlu0 %1440
    %1444 = vst.msk [vmem:[%s3 + $0x4] sm:$0x1] %vm1403, %v1439
    %1445 = vst.msk [vmem:[%s3 + $0x34] sm:$0x1] %vm1403, %v1441
    %1446 = vrot.lane.b32.xlu0 %v1409, 48
    %v1447 = vpop.permute.xlu0 %1446
    %1448 = vrot.lane.b32.xlu0 %v1413, 48
    %v1449 = vpop.permute.xlu0 %1448
    %1452 = vst.msk [vmem:[%s3 + $0x5] sm:$0x1] %vm1403, %v1447
    %1453 = vst.msk [vmem:[%s3 + $0x35] sm:$0x1] %vm1403, %v1449
    %1454 = vrot.lane.b32.xlu0 %v1409, 32
    %v1455 = vpop.permute.xlu0 %1454
    %1456 = vrot.lane.b32.xlu0 %v1413, 32
    %v1457 = vpop.permute.xlu0 %1456
    %1460 = vst.msk [vmem:[%s3 + $0x6] sm:$0x1] %vm1403, %v1455
    %1461 = vst.msk [vmem:[%s3 + $0x36] sm:$0x1] %vm1403, %v1457
    %1462 = vrot.lane.b32.xlu0 %v1409, 16
    %v1463 = vpop.permute.xlu0 %1462
    %1464 = vrot.lane.b32.xlu0 %v1413, 16
    %v1465 = vpop.permute.xlu0 %1464
    %1468 = vst.msk [vmem:[%s3 + $0x7] sm:$0x1] %vm1403, %v1463
    %1469 = vst.msk [vmem:[%s3 + $0x37] sm:$0x1] %vm1403, %v1465
    %v1472 = vunpack.c.l.s4 1966171168
    %v1473 = vunpack.c.0.s8 %v1472
    %v1474 = vlaneseq
    %v1475 = vshrl.u32 %v1474, 7
    %v1476 = vsub.s32 %v1473, %v1475
    %v1477 = vrot.slane %v1377, %v1476
    %v1478 = vcombine.high %v1477, %v1477
    %v1480 = vunpack.c.l.s4 1966171168
    %v1481 = vunpack.c.0.s8 %v1480
    %v1482 = vlaneseq
    %v1483 = vshrl.u32 %v1482, 7
    %v1484 = vsub.s32 %v1481, %v1483
    %v1485 = vrot.slane %v1477, %v1484
    %v1487 = vunpack.c.l.s4 1966171168
    %v1488 = vunpack.c.0.s8 %v1487
    %v1489 = vlaneseq
    %v1490 = vshrl.u32 %v1489, 7
    %v1491 = vsub.s32 %v1488, %v1490
    %v1492 = vrot.slane %v1478, %v1491
    %1495 = vst.msk [vmem:[%s3 + $0x8] sm:$0x1] %vm1403, %v1485
    %1496 = vst.msk [vmem:[%s3 + $0x38] sm:$0x1] %vm1403, %v1492
    %v1497 = vlaneseq
    %v1498 = vshrl.u32 %v1497, 7
    %v1499 = vsub.s32 0, %v1498
    %v1500 = vrot.slane %v1485, %v1499
    %v1501 = vlaneseq
    %v1502 = vshrl.u32 %v1501, 7
    %v1503 = vsub.s32 0, %v1502
    %v1504 = vrot.slane %v1492, %v1503
    %1505 = vrot.lane.b32.xlu0 %v1500, 112
    %v1506 = vpop.permute.xlu0 %1505
    %1507 = vrot.lane.b32.xlu0 %v1504, 112
    %v1508 = vpop.permute.xlu0 %1507
    %1511 = vst.msk [vmem:[%s3 + $0x9] sm:$0x1] %vm1403, %v1506
    %1512 = vst.msk [vmem:[%s3 + $0x39] sm:$0x1] %vm1403, %v1508
    %1513 = vrot.lane.b32.xlu0 %v1500, 96
    %v1514 = vpop.permute.xlu0 %1513
    %1515 = vrot.lane.b32.xlu0 %v1504, 96
    %v1516 = vpop.permute.xlu0 %1515
    %1519 = vst.msk [vmem:[%s3 + $0xa] sm:$0x1] %vm1403, %v1514
    %1520 = vst.msk [vmem:[%s3 + $0x3a] sm:$0x1] %vm1403, %v1516
    %1521 = vrot.lane.b32.xlu0 %v1500, 80
    %v1522 = vpop.permute.xlu0 %1521
    %1523 = vrot.lane.b32.xlu0 %v1504, 80
    %v1524 = vpop.permute.xlu0 %1523
    %1527 = vst.msk [vmem:[%s3 + $0xb] sm:$0x1] %vm1403, %v1522
    %1528 = vst.msk [vmem:[%s3 + $0x3b] sm:$0x1] %vm1403, %v1524
    %1531 = vrot.lane.b32.xlu0 %v1251, 127
    %v1532 = vpop.permute.xlu0 %1531
    %1533 = vrot.lane.b32.xlu0 %v1252, 127
    %v1534 = vpop.permute.xlu0 %1533
    %v1535 = vsel %vm1348, %v1532, %v1534
    %v1538 = vadd.f32 %v1318, %v1535
    %v1539 = vadd.f32 %v1319, %v1534
    %v1542 = vrot.slane %v1538, 2
    %v1543 = vrot.slane %v1539, 2
    %v1546 = vadd.f32 %v1538, %v1542
    %v1547 = vadd.f32 %v1539, %v1543
    %v1548 = vrot.slane %v1538, 4
    %v1549 = vrot.slane %v1539, 4
    %v1552 = vadd.f32 %v1546, %v1548
    %v1553 = vadd.f32 %v1547, %v1549
    %v1554 = vrot.slane %v1538, 6
    %v1555 = vrot.slane %v1539, 6
    %v1558 = vadd.f32 %v1552, %v1554
    %v1559 = vadd.f32 %v1553, %v1555
    %s1560 = sld [smem:[#allocation3 + $0x1]]
    %v1561 = vstv %s1560
    %v1562 = vadd.f32 %v1558, %v1561
    %v1563 = vadd.f32 %v1559, %v1561
    %v1566 = vunpack.c.l.s4 1966171168
    %v1567 = vunpack.c.0.s8 %v1566
    %v1568 = vlaneseq
    %v1569 = vshrl.u32 %v1568, 7
    %v1570 = vsub.s32 %v1567, %v1569
    %v1571 = vrot.slane %v1562, %v1570
    %v1572 = vcombine.high %v1571, %v1571
    %v1574 = vunpack.c.l.s4 1966171168
    %v1575 = vunpack.c.0.s8 %v1574
    %v1576 = vlaneseq
    %v1577 = vshrl.u32 %v1576, 7
    %v1578 = vsub.s32 %v1575, %v1577
    %v1579 = vrot.slane %v1571, %v1578
    %v1581 = vunpack.c.l.s4 1966171168
    %v1582 = vunpack.c.0.s8 %v1581
    %v1583 = vlaneseq
    %v1584 = vshrl.u32 %v1583, 7
    %v1585 = vsub.s32 %v1582, %v1584
    %v1586 = vrot.slane %v1572, %v1585
    %s1589 = scalar_lea.vmem %s3, 16
    %1590 = vst.msk [vmem:[%s1589] sm:$0x1] %vm1403, %v1579
    %1591 = vst.msk [vmem:[%s1589 + $0x30] sm:$0x1] %vm1403, %v1586
    %v1592 = vlaneseq
    %v1593 = vshrl.u32 %v1592, 7
    %v1594 = vsub.s32 0, %v1593
    %v1595 = vrot.slane %v1579, %v1594
    %v1596 = vlaneseq
    %v1597 = vshrl.u32 %v1596, 7
    %v1598 = vsub.s32 0, %v1597
    %v1599 = vrot.slane %v1586, %v1598
    %1600 = vrot.lane.b32.xlu0 %v1595, 112
    %v1601 = vpop.permute.xlu0 %1600
    %1602 = vrot.lane.b32.xlu0 %v1599, 112
    %v1603 = vpop.permute.xlu0 %1602
    %1606 = vst.msk [vmem:[%s1589 + $0x1] sm:$0x1] %vm1403, %v1601
    %1607 = vst.msk [vmem:[%s1589 + $0x31] sm:$0x1] %vm1403, %v1603
    %1608 = vrot.lane.b32.xlu0 %v1595, 96
    %v1609 = vpop.permute.xlu0 %1608
    %1610 = vrot.lane.b32.xlu0 %v1599, 96
    %v1611 = vpop.permute.xlu0 %1610
    %1614 = vst.msk [vmem:[%s1589 + $0x2] sm:$0x1] %vm1403, %v1609
    %1615 = vst.msk [vmem:[%s1589 + $0x32] sm:$0x1] %vm1403, %v1611
    %1616 = vrot.lane.b32.xlu0 %v1595, 80
    %v1617 = vpop.permute.xlu0 %1616
    %1618 = vrot.lane.b32.xlu0 %v1599, 80
    %v1619 = vpop.permute.xlu0 %1618
    %1622 = vst.msk [vmem:[%s1589 + $0x3] sm:$0x1] %vm1403, %v1617
    %1623 = vst.msk [vmem:[%s1589 + $0x33] sm:$0x1] %vm1403, %v1619
    %1624 = vrot.lane.b32.xlu0 %v1595, 64
    %v1625 = vpop.permute.xlu0 %1624
    %1626 = vrot.lane.b32.xlu0 %v1599, 64
    %v1627 = vpop.permute.xlu0 %1626
    %1630 = vst.msk [vmem:[%s1589 + $0x4] sm:$0x1] %vm1403, %v1625
    %1631 = vst.msk [vmem:[%s1589 + $0x34] sm:$0x1] %vm1403, %v1627
    %1632 = vrot.lane.b32.xlu0 %v1595, 48
    %v1633 = vpop.permute.xlu0 %1632
    %1634 = vrot.lane.b32.xlu0 %v1599, 48
    %v1635 = vpop.permute.xlu0 %1634
    %1638 = vst.msk [vmem:[%s1589 + $0x5] sm:$0x1] %vm1403, %v1633
    %1639 = vst.msk [vmem:[%s1589 + $0x35] sm:$0x1] %vm1403, %v1635
    %1640 = vrot.lane.b32.xlu0 %v1595, 32
    %v1641 = vpop.permute.xlu0 %1640
    %1642 = vrot.lane.b32.xlu0 %v1599, 32
    %v1643 = vpop.permute.xlu0 %1642
    %1646 = vst.msk [vmem:[%s1589 + $0x6] sm:$0x1] %vm1403, %v1641
    %1647 = vst.msk [vmem:[%s1589 + $0x36] sm:$0x1] %vm1403, %v1643
    %1648 = vrot.lane.b32.xlu0 %v1595, 16
    %v1649 = vpop.permute.xlu0 %1648
    %1650 = vrot.lane.b32.xlu0 %v1599, 16
    %v1651 = vpop.permute.xlu0 %1650
    %1654 = vst.msk [vmem:[%s1589 + $0x7] sm:$0x1] %vm1403, %v1649
    %1655 = vst.msk [vmem:[%s1589 + $0x37] sm:$0x1] %vm1403, %v1651
    %v1658 = vunpack.c.l.s4 1966171168
    %v1659 = vunpack.c.0.s8 %v1658
    %v1660 = vlaneseq
    %v1661 = vshrl.u32 %v1660, 7
    %v1662 = vsub.s32 %v1659, %v1661
    %v1663 = vrot.slane %v1563, %v1662
    %v1664 = vcombine.high %v1663, %v1663
    %v1666 = vunpack.c.l.s4 1966171168
    %v1667 = vunpack.c.0.s8 %v1666
    %v1668 = vlaneseq
    %v1669 = vshrl.u32 %v1668, 7
    %v1670 = vsub.s32 %v1667, %v1669
    %v1671 = vrot.slane %v1663, %v1670
    %v1673 = vunpack.c.l.s4 1966171168
    %v1674 = vunpack.c.0.s8 %v1673
    %v1675 = vlaneseq
    %v1676 = vshrl.u32 %v1675, 7
    %v1677 = vsub.s32 %v1674, %v1676
    %v1678 = vrot.slane %v1664, %v1677
    %1681 = vst.msk [vmem:[%s1589 + $0x8] sm:$0x1] %vm1403, %v1671
    %1682 = vst.msk [vmem:[%s1589 + $0x38] sm:$0x1] %vm1403, %v1678
    %v1683 = vlaneseq
    %v1684 = vshrl.u32 %v1683, 7
    %v1685 = vsub.s32 0, %v1684
    %v1686 = vrot.slane %v1671, %v1685
    %v1687 = vlaneseq
    %v1688 = vshrl.u32 %v1687, 7
    %v1689 = vsub.s32 0, %v1688
    %v1690 = vrot.slane %v1678, %v1689
    %1691 = vrot.lane.b32.xlu0 %v1686, 112
    %v1692 = vpop.permute.xlu0 %1691
    %1693 = vrot.lane.b32.xlu0 %v1690, 112
    %v1694 = vpop.permute.xlu0 %1693
    %1697 = vst.msk [vmem:[%s1589 + $0x9] sm:$0x1] %vm1403, %v1692
    %1698 = vst.msk [vmem:[%s1589 + $0x39] sm:$0x1] %vm1403, %v1694
    %1699 = vrot.lane.b32.xlu0 %v1686, 96
    %v1700 = vpop.permute.xlu0 %1699
    %1701 = vrot.lane.b32.xlu0 %v1690, 96
    %v1702 = vpop.permute.xlu0 %1701
    %1705 = vst.msk [vmem:[%s1589 + $0xa] sm:$0x1] %vm1403, %v1700
    %1706 = vst.msk [vmem:[%s1589 + $0x3a] sm:$0x1] %vm1403, %v1702
    %1707 = vrot.lane.b32.xlu0 %v1686, 80
    %v1708 = vpop.permute.xlu0 %1707
    %1709 = vrot.lane.b32.xlu0 %v1690, 80
    %v1710 = vpop.permute.xlu0 %1709
    %1713 = vst.msk [vmem:[%s1589 + $0xb] sm:$0x1] %vm1403, %v1708
    %1714 = vst.msk [vmem:[%s1589 + $0x3b] sm:$0x1] %vm1403, %v1710
    %1717 = vrot.lane.b32.xlu0 %v1273, 127
    %v1718 = vpop.permute.xlu0 %1717
    %1719 = vrot.lane.b32.xlu0 %v1274, 127
    %v1720 = vpop.permute.xlu0 %1719
    %v1721 = vsel %vm1348, %v1718, %v1720
    %v1724 = vadd.f32 %v1340, %v1721
    %v1725 = vadd.f32 %v1341, %v1720
    %v1728 = vrot.slane %v1724, 2
    %v1729 = vrot.slane %v1725, 2
    %v1732 = vadd.f32 %v1724, %v1728
    %v1733 = vadd.f32 %v1725, %v1729
    %v1734 = vrot.slane %v1724, 4
    %v1735 = vrot.slane %v1725, 4
    %v1738 = vadd.f32 %v1732, %v1734
    %v1739 = vadd.f32 %v1733, %v1735
    %v1740 = vrot.slane %v1724, 6
    %v1741 = vrot.slane %v1725, 6
    %v1744 = vadd.f32 %v1738, %v1740
    %v1745 = vadd.f32 %v1739, %v1741
    %s1746 = sld [smem:[#allocation3 + $0x2]]
    %v1747 = vstv %s1746
    %v1748 = vadd.f32 %v1744, %v1747
    %v1749 = vadd.f32 %v1745, %v1747
    %v1752 = vunpack.c.l.s4 1966171168
    %v1753 = vunpack.c.0.s8 %v1752
    %v1754 = vlaneseq
    %v1755 = vshrl.u32 %v1754, 7
    %v1756 = vsub.s32 %v1753, %v1755
    %v1757 = vrot.slane %v1748, %v1756
    %v1758 = vcombine.high %v1757, %v1757
    %v1760 = vunpack.c.l.s4 1966171168
    %v1761 = vunpack.c.0.s8 %v1760
    %v1762 = vlaneseq
    %v1763 = vshrl.u32 %v1762, 7
    %v1764 = vsub.s32 %v1761, %v1763
    %v1765 = vrot.slane %v1757, %v1764
    %v1767 = vunpack.c.l.s4 1966171168
    %v1768 = vunpack.c.0.s8 %v1767
    %v1769 = vlaneseq
    %v1770 = vshrl.u32 %v1769, 7
    %v1771 = vsub.s32 %v1768, %v1770
    %v1772 = vrot.slane %v1758, %v1771
    %s1775 = scalar_lea.vmem %s3, 32
    %1776 = vst.msk [vmem:[%s1775] sm:$0x1] %vm1403, %v1765
    %1777 = vst.msk [vmem:[%s1775 + $0x30] sm:$0x1] %vm1403, %v1772
    %v1778 = vlaneseq
    %v1779 = vshrl.u32 %v1778, 7
    %v1780 = vsub.s32 0, %v1779
    %v1781 = vrot.slane %v1765, %v1780
    %v1782 = vlaneseq
    %v1783 = vshrl.u32 %v1782, 7
    %v1784 = vsub.s32 0, %v1783
    %v1785 = vrot.slane %v1772, %v1784
    %1786 = vrot.lane.b32.xlu0 %v1781, 112
    %v1787 = vpop.permute.xlu0 %1786
    %1788 = vrot.lane.b32.xlu0 %v1785, 112
    %v1789 = vpop.permute.xlu0 %1788
    %1792 = vst.msk [vmem:[%s1775 + $0x1] sm:$0x1] %vm1403, %v1787
    %1793 = vst.msk [vmem:[%s1775 + $0x31] sm:$0x1] %vm1403, %v1789
    %1794 = vrot.lane.b32.xlu0 %v1781, 96
    %v1795 = vpop.permute.xlu0 %1794
    %1796 = vrot.lane.b32.xlu0 %v1785, 96
    %v1797 = vpop.permute.xlu0 %1796
    %1800 = vst.msk [vmem:[%s1775 + $0x2] sm:$0x1] %vm1403, %v1795
    %1801 = vst.msk [vmem:[%s1775 + $0x32] sm:$0x1] %vm1403, %v1797
    %1802 = vrot.lane.b32.xlu0 %v1781, 80
    %v1803 = vpop.permute.xlu0 %1802
    %1804 = vrot.lane.b32.xlu0 %v1785, 80
    %v1805 = vpop.permute.xlu0 %1804
    %1808 = vst.msk [vmem:[%s1775 + $0x3] sm:$0x1] %vm1403, %v1803
    %1809 = vst.msk [vmem:[%s1775 + $0x33] sm:$0x1] %vm1403, %v1805
    %1810 = vrot.lane.b32.xlu0 %v1781, 64
    %v1811 = vpop.permute.xlu0 %1810
    %1812 = vrot.lane.b32.xlu0 %v1785, 64
    %v1813 = vpop.permute.xlu0 %1812
    %1816 = vst.msk [vmem:[%s1775 + $0x4] sm:$0x1] %vm1403, %v1811
    %1817 = vst.msk [vmem:[%s1775 + $0x34] sm:$0x1] %vm1403, %v1813
    %1818 = vrot.lane.b32.xlu0 %v1781, 48
    %v1819 = vpop.permute.xlu0 %1818
    %1820 = vrot.lane.b32.xlu0 %v1785, 48
    %v1821 = vpop.permute.xlu0 %1820
    %1824 = vst.msk [vmem:[%s1775 + $0x5] sm:$0x1] %vm1403, %v1819
    %1825 = vst.msk [vmem:[%s1775 + $0x35] sm:$0x1] %vm1403, %v1821
    %1826 = vrot.lane.b32.xlu0 %v1781, 32
    %v1827 = vpop.permute.xlu0 %1826
    %1828 = vrot.lane.b32.xlu0 %v1785, 32
    %v1829 = vpop.permute.xlu0 %1828
    %1832 = vst.msk [vmem:[%s1775 + $0x6] sm:$0x1] %vm1403, %v1827
    %1833 = vst.msk [vmem:[%s1775 + $0x36] sm:$0x1] %vm1403, %v1829
    %1834 = vrot.lane.b32.xlu0 %v1781, 16
    %v1835 = vpop.permute.xlu0 %1834
    %1836 = vrot.lane.b32.xlu0 %v1785, 16
    %v1837 = vpop.permute.xlu0 %1836
    %1840 = vst.msk [vmem:[%s1775 + $0x7] sm:$0x1] %vm1403, %v1835
    %1841 = vst.msk [vmem:[%s1775 + $0x37] sm:$0x1] %vm1403, %v1837
    %v1844 = vunpack.c.l.s4 1966171168
    %v1845 = vunpack.c.0.s8 %v1844
    %v1846 = vlaneseq
    %v1847 = vshrl.u32 %v1846, 7
    %v1848 = vsub.s32 %v1845, %v1847
    %v1849 = vrot.slane %v1749, %v1848
    %v1850 = vcombine.high %v1849, %v1849
    %v1852 = vunpack.c.l.s4 1966171168
    %v1853 = vunpack.c.0.s8 %v1852
    %v1854 = vlaneseq
    %v1855 = vshrl.u32 %v1854, 7
    %v1856 = vsub.s32 %v1853, %v1855
    %v1857 = vrot.slane %v1849, %v1856
    %v1859 = vunpack.c.l.s4 1966171168
    %v1860 = vunpack.c.0.s8 %v1859
    %v1861 = vlaneseq
    %v1862 = vshrl.u32 %v1861, 7
    %v1863 = vsub.s32 %v1860, %v1862
    %v1864 = vrot.slane %v1850, %v1863
    %1867 = vst.msk [vmem:[%s1775 + $0x8] sm:$0x1] %vm1403, %v1857
    %1868 = vst.msk [vmem:[%s1775 + $0x38] sm:$0x1] %vm1403, %v1864
    %v1869 = vlaneseq
    %v1870 = vshrl.u32 %v1869, 7
    %v1871 = vsub.s32 0, %v1870
    %v1872 = vrot.slane %v1857, %v1871
    %v1873 = vlaneseq
    %v1874 = vshrl.u32 %v1873, 7
    %v1875 = vsub.s32 0, %v1874
    %v1876 = vrot.slane %v1864, %v1875
    %1877 = vrot.lane.b32.xlu0 %v1872, 112
    %v1878 = vpop.permute.xlu0 %1877
    %1879 = vrot.lane.b32.xlu0 %v1876, 112
    %v1880 = vpop.permute.xlu0 %1879
    %1883 = vst.msk [vmem:[%s1775 + $0x9] sm:$0x1] %vm1403, %v1878
    %1884 = vst.msk [vmem:[%s1775 + $0x39] sm:$0x1] %vm1403, %v1880
    %1885 = vrot.lane.b32.xlu0 %v1872, 96
    %v1886 = vpop.permute.xlu0 %1885
    %1887 = vrot.lane.b32.xlu0 %v1876, 96
    %v1888 = vpop.permute.xlu0 %1887
    %1891 = vst.msk [vmem:[%s1775 + $0xa] sm:$0x1] %vm1403, %v1886
    %1892 = vst.msk [vmem:[%s1775 + $0x3a] sm:$0x1] %vm1403, %v1888
    %1893 = vrot.lane.b32.xlu0 %v1872, 80
    %v1894 = vpop.permute.xlu0 %1893
    %1895 = vrot.lane.b32.xlu0 %v1876, 80
    %v1896 = vpop.permute.xlu0 %1895
    %1899 = vst.msk [vmem:[%s1775 + $0xb] sm:$0x1] %vm1403, %v1894
    %1900 = vst.msk [vmem:[%s1775 + $0x3b] sm:$0x1] %vm1403, %v1896
    // Predicated region
    $region18: #{tpu_custom_call.1} parent=1 // pred_check
      _
    $region19: #{tpu_custom_call.1} parent=1 // pred_check_branch
      %1902 = sbr.rel (0) target = $region21
    $region20: #{tpu_custom_call.1} parent=1 // pred_region
      _
    $region21: #{tpu_custom_call.1} parent=1 // pred_fallthru
      _
    // Predicated region
    $region22: #{tpu_custom_call.1} parent=1 // pred_check
      _
    $region23: #{tpu_custom_call.1} parent=1 // pred_check_branch
      %1904 = sbr.rel (0) target = $region25
    $region24: #{tpu_custom_call.1} parent=1 // pred_region
      _
    $region25: #{tpu_custom_call.1} parent=1 // pred_fallthru
      _
    %1905 = vsyncpa [#allocation5], 1
    %1906 = vsyncpa [#allocation7], 1

</llo_original>
